<compile_context>
chip_gen: v7x
topology: tpu7x:2x2x1
jax: 0.10.0
libtpu: 0.0.40
codegen_flags: <defaults>
</compile_context>

<pallas_src>
import functools

import jax
import jax.numpy as jnp
from jax.experimental import pallas as pl
from jax.experimental.pallas import tpu as pltpu


def _gate_update(gates, c_prev):
    """PyTorch LSTM gate order: i, f, g, o.  gates: (N, 4H) f32, c_prev: (N, H) f32."""
    H = c_prev.shape[-1]
    i = jax.nn.sigmoid(gates[:, 0 * H:1 * H])
    f = jax.nn.sigmoid(gates[:, 1 * H:2 * H])
    g = jnp.tanh(gates[:, 2 * H:3 * H])
    o = jax.nn.sigmoid(gates[:, 3 * H:4 * H])
    c_new = f * c_prev + i * g
    h_new = o * jnp.tanh(c_new)
    return h_new, c_new


def decoder_kernel(
    xh0_ref,            # (N, E+H)   bf16  [emb(x) ++ h_prev layer-0]   (resident)
    h_ref,              # (2, N, H)  f32   previous hidden state        (resident)
    c_ref,              # (2, N, H)  f32   previous cell state          (resident)
    w0_ref, b0_ref,     # (E+H, 4H) bf16, (1, 4H) f32  fused layer-0 weights
    w1_ref, b1_ref,     # (2H, 4H)  bf16, (1, 4H) f32  fused layer-1 weights
    wfc_ref, bfc_ref,   # (H, TV)   bf16, (1, TV) f32  fc tile for this grid step
    pred_ref,           # out: (N, TV) f32
    h_out_ref,          # out: (2, N, H) f32  (HBM buffer aliased with h_ref)
    c_out_ref,          # out: (2, N, H) f32  (HBM buffer aliased with c_ref)
    h1_scratch,         # scratch: (N, H) bf16  top-layer output, persists across grid
):
    # The two LSTM layers are computed exactly once (first vocab tile); the fc
    # weight tiles keep streaming through VMEM on every grid step.
    @pl.when(pl.program_id(0) == 0)
    def _():
        # Layer 0: single fused matmul  [x, h0] @ [W_ih0; W_hh0]  (+ b_ih + b_hh).
        gates0 = (
            jnp.dot(xh0_ref[...], w0_ref[...], preferred_element_type=jnp.float32)
            + b0_ref[...]
        )
        h0n, c0n = _gate_update(gates0, c_ref[0])

        # TODO(synk): embedding dropout and inter-layer LSTM dropout are identity
        # in eval mode; training-mode stochastic dropout is not implemented here.

        # Layer 1: single fused matmul  [h0n, h1] @ [W_ih1; W_hh1].
        xh1 = jnp.concatenate([h0n, h_ref[1]], axis=-1).astype(jnp.bfloat16)
        gates1 = (
            jnp.dot(xh1, w1_ref[...], preferred_element_type=jnp.float32)
            + b1_ref[...]
        )
        h1n, c1n = _gate_update(gates1, c_ref[1])

        h1_scratch[...] = h1n.astype(jnp.bfloat16)
        h_out_ref[0] = h0n
        h_out_ref[1] = h1n
        c_out_ref[0] = c0n
        c_out_ref[1] = c1n

    # fc projection for this vocab tile (weights streamed / double-buffered).
    pred_ref[...] = (
        jnp.dot(h1_scratch[...], wfc_ref[...], preferred_element_type=jnp.float32)
        + bfc_ref[...]
    )


@functools.partial(jax.jit, static_argnames=("tile_v",))
def decoder_forward(x_tokens, hidden, cell, params, tile_v=512):
    """Pallas-backed Decoder.forward (eval mode).

    x_tokens: (N,) int32; hidden, cell: (2, N, H) f32.
    Returns (predictions (N, V) f32, hidden (2, N, H) f32, cell (2, N, H) f32).
    """
    # Embedding lookup stays in XLA glue (tiny vs. the weight streaming).
    # TODO(synk): could be fused via PrefetchScalarGridSpec row-gather on the
    # embedding table to drop one (N, E) HBM round trip.
    emb = jnp.take(params["emb_table"], x_tokens, axis=0)          # (N, E) f32

    N, E = emb.shape
    H = hidden.shape[-1]
    V = params["w_fc_t"].shape[-1]

    tv = tile_v if (tile_v <= V and V % tile_v == 0) else V
    num_v_tiles = V // tv

    # Fused layer-0 input [emb, h0] (concat is trivial XLA glue; the layer-1
    # concat happens in-kernel because it needs h0n).
    xh0 = jnp.concatenate([emb, hidden[0]], axis=-1).astype(jnp.bfloat16)

    grid_spec = pltpu.PrefetchScalarGridSpec(
        num_scalar_prefetch=0,
        grid=(num_v_tiles,),
        in_specs=[
            pl.BlockSpec((N, E + H), lambda j: (0, 0)),        # xh0       (resident)
            pl.BlockSpec((2, N, H), lambda j: (0, 0, 0)),      # hidden    (resident)
            pl.BlockSpec((2, N, H), lambda j: (0, 0, 0)),      # cell      (resident)
            pl.BlockSpec((E + H, 4 * H), lambda j: (0, 0)),    # w0        (resident)
            pl.BlockSpec((1, 4 * H), lambda j: (0, 0)),        # b0
            pl.BlockSpec((2 * H, 4 * H), lambda j: (0, 0)),    # w1        (resident)
            pl.BlockSpec((1, 4 * H), lambda j: (0, 0)),        # b1
            pl.BlockSpec((H, tv), lambda j: (0, j)),           # w_fc tile (streamed)
            pl.BlockSpec((1, tv), lambda j: (0, j)),           # b_fc tile
        ],
        out_specs=[
            pl.BlockSpec((N, tv), lambda j: (0, j)),           # pred tile
            pl.BlockSpec((2, N, H), lambda j: (0, 0, 0)),      # h_out     (resident)
            pl.BlockSpec((2, N, H), lambda j: (0, 0, 0)),      # c_out     (resident)
        ],
        scratch_shapes=[pltpu.VMEM((N, H), jnp.bfloat16)],
    )

    pred, h_out, c_out = pl.pallas_call(
        decoder_kernel,
        out_shape=(
            jax.ShapeDtypeStruct((N, V), jnp.float32),
            jax.ShapeDtypeStruct((2, N, H), jnp.float32),
            jax.ShapeDtypeStruct((2, N, H), jnp.float32),
        ),
        grid_spec=grid_spec,
        # In-place recurrent state update: incoming hidden/cell HBM buffers are
        # reused for the new states.
        input_output_aliases={1: 1, 2: 2},
        compiler_params=pltpu.CompilerParams(
            # The vocab axis carries the h1 scratch written at step 0, so it is
            # a sequential ("arbitrary") axis, not megacore-parallel.
            dimension_semantics=("arbitrary",),
            vmem_limit_bytes=64 * 1024 * 1024,
        ),
    )(
        xh0, hidden, cell,
        params["w0_t"], params["b0"],
        params["w1_t"], params["b1"],
        params["w_fc_t"], params["b_fc"],
    )
    return pred, h_out, c_out


def reference_forward(x_tokens, hidden, cell, params):
    """Pure-JAX reference with the same bf16-weight numerics as the kernel."""
    emb = jnp.take(params["emb_table"], x_tokens, axis=0)
    xh0 = jnp.concatenate([emb, hidden[0]], axis=-1).astype(jnp.bfloat16)
    g0 = jnp.dot(xh0, params["w0_t"], preferred_element_type=jnp.float32) + params["b0"]
    h0n, c0n = _gate_update(g0, cell[0])
    xh1 = jnp.concatenate([h0n, hidden[1]], axis=-1).astype(jnp.bfloat16)
    g1 = jnp.dot(xh1, params["w1_t"], preferred_element_type=jnp.float32) + params["b1"]
    h1n, c1n = _gate_update(g1, cell[1])
    pred = (
        jnp.dot(h1n.astype(jnp.bfloat16), params["w_fc_t"],
                preferred_element_type=jnp.float32)
        + params["b_fc"]
    )
    return pred, jnp.stack([h0n, h1n]), jnp.stack([c0n, c1n])


def init_params(key, vocab_size, embedding_size, hidden_size, output_size):
    """Deterministic synthetic parameters (PyTorch-style uniform init), pre-fused,
    pre-transposed to (in_features, out_features), and bf16-cast for the kernel."""
    ks = jax.random.split(key, 11)
    H, E, V = hidden_size, embedding_size, output_size
    s = 1.0 / jnp.sqrt(H)

    def u(k, shape):
        return jax.random.uniform(k, shape, jnp.float32, minval=-s, maxval=s)

    w_ih0_t = u(ks[1], (E, 4 * H))
    w_hh0_t = u(ks[2], (H, 4 * H))
    w_ih1_t = u(ks[5], (H, 4 * H))
    w_hh1_t = u(ks[6], (H, 4 * H))

    return {
        "emb_table": jax.random.normal(ks[0], (vocab_size, E), jnp.float32),
        # Fused [W_ih; W_hh] per layer -> one (in, 4H) bf16 matrix per layer.
        "w0_t": jnp.concatenate([w_ih0_t, w_hh0_t], axis=0).astype(jnp.bfloat16),
        "b0": u(ks[3], (1, 4 * H)) + u(ks[4], (1, 4 * H)),   # b_ih + b_hh
        "w1_t": jnp.concatenate([w_ih1_t, w_hh1_t], axis=0).astype(jnp.bfloat16),
        "b1": u(ks[7], (1, 4 * H)) + u(ks[8], (1, 4 * H)),
        "w_fc_t": u(ks[9], (H, V)).astype(jnp.bfloat16),
        "b_fc": u(ks[10], (1, V)),
    }


if __name__ == "__main__":
    # Small shapes consistent with the module (scaled down from E=300, H=1024):
    batch = 8
    vocab_size = 512         # stand-in for len(english.vocab)
    embedding_size = 32      # 300 in the original
    hidden_size = 128        # 1024 in the original (multiple of 128 -> lane-aligned gates)
    output_size = vocab_size
    number_layers = 2

    key = jax.random.PRNGKey(0)
    k_par, k_tok, k_h, k_c = jax.random.split(key, 4)

    params = init_params(k_par, vocab_size, embedding_size, hidden_size, output_size)

    x = jax.random.randint(k_tok, (batch,), 0, vocab_size, dtype=jnp.int32)
    hidden = jax.random.normal(k_h, (number_layers, batch, hidden_size), jnp.float32)
    cell = jax.random.normal(k_c, (number_layers, batch, hidden_size), jnp.float32)

    # tile_v=128 -> grid of 4 vocab tiles to exercise the pipelined fc streaming.
    pred, h_new, c_new = decoder_forward(x, hidden, cell, params, tile_v=128)
    jax.block_until_ready((pred, h_new, c_new))

    # Correctness check against the pure-JAX reference (same bf16 weights).
    pred_r, h_r, c_r = reference_forward(x, hidden, cell, params)

    assert pred.shape == (batch, output_size)
    assert h_new.shape == (number_layers, batch, hidden_size)
    assert c_new.shape == (number_layers, batch, hidden_size)
    assert jnp.allclose(pred, pred_r, atol=1e-2, rtol=1e-2)
    assert jnp.allclose(h_new, h_r, atol=1e-2, rtol=1e-2)
    assert jnp.allclose(c_new, c_r, atol=1e-2, rtol=1e-2)

    print("KERNEL_OK")
</pallas_src>

<mosaic_0001>
module attributes {stable_mosaic.version = 11 : i64} {
  func.func @decoder_kernel(%arg0: i32, %arg1: memref<8x160xbf16, #tpu.memory_space<vmem>>, %arg2: memref<2x8x128xf32, #tpu.memory_space<vmem>>, %arg3: memref<2x8x128xf32, #tpu.memory_space<vmem>>, %arg4: memref<160x512xbf16, #tpu.memory_space<vmem>>, %arg5: memref<1x512xf32, #tpu.memory_space<vmem>>, %arg6: memref<256x512xbf16, #tpu.memory_space<vmem>>, %arg7: memref<1x512xf32, #tpu.memory_space<vmem>>, %arg8: memref<128x128xbf16, #tpu.memory_space<vmem>>, %arg9: memref<1x128xf32, #tpu.memory_space<vmem>>, %arg10: memref<8x128xf32, #tpu.memory_space<vmem>>, %arg11: memref<2x8x128xf32, #tpu.memory_space<vmem>>, %arg12: memref<2x8x128xf32, #tpu.memory_space<vmem>>, %arg13: memref<8x128xbf16, #tpu.memory_space<vmem>>) attributes {dimension_semantics = [#tpu.dimension_semantics<arbitrary>], iteration_bounds = array<i64: 4>, scalar_prefetch = 0 : i64, scratch_operands = 1 : i64, tpu.core_type = #tpu.core_type<tc>, window_params = [{pipeline_mode = #tpu.pipeline_mode<synchronous>, transform_indices = @transform_0, window_bounds = array<i64: 8, 160>}, {pipeline_mode = #tpu.pipeline_mode<synchronous>, transform_indices = @transform_1, window_bounds = array<i64: 2, 8, 128>}, {pipeline_mode = #tpu.pipeline_mode<synchronous>, transform_indices = @transform_2, window_bounds = array<i64: 2, 8, 128>}, {pipeline_mode = #tpu.pipeline_mode<synchronous>, transform_indices = @transform_3, window_bounds = array<i64: 160, 512>}, {pipeline_mode = #tpu.pipeline_mode<synchronous>, transform_indices = @transform_4, window_bounds = array<i64: 1, 512>}, {pipeline_mode = #tpu.pipeline_mode<synchronous>, transform_indices = @transform_5, window_bounds = array<i64: 256, 512>}, {pipeline_mode = #tpu.pipeline_mode<synchronous>, transform_indices = @transform_6, window_bounds = array<i64: 1, 512>}, {transform_indices = @transform_7, window_bounds = array<i64: 128, 128>}, {transform_indices = @transform_8, window_bounds = array<i64: 1, 128>}, {transform_indices = @transform_9, window_bounds = array<i64: 8, 128>}, {pipeline_mode = #tpu.pipeline_mode<synchronous>, transform_indices = @transform_10, window_bounds = array<i64: 2, 8, 128>}, {pipeline_mode = #tpu.pipeline_mode<synchronous>, transform_indices = @transform_11, window_bounds = array<i64: 2, 8, 128>}]} {
    %c0_i32 = arith.constant 0 : i32
    %0 = arith.cmpi eq, %arg0, %c0_i32 : i32
    %1 = arith.extui %0 : i1 to i32
    %c0_i32_0 = arith.constant 0 : i32
    %2 = arith.cmpi ne, %1, %c0_i32_0 : i32
    scf.if %2 {
      %c0_8 = arith.constant 0 : index
      %c0_9 = arith.constant 0 : index
      %10 = vector.load %arg1[%c0_8, %c0_9] : memref<8x160xbf16, #tpu.memory_space<vmem>>, vector<8x160xbf16>
      %c0_10 = arith.constant 0 : index
      %c0_11 = arith.constant 0 : index
      %11 = vector.load %arg4[%c0_10, %c0_11] : memref<160x512xbf16, #tpu.memory_space<vmem>>, vector<160x512xbf16>
      %cst_12 = arith.constant dense<0.000000e+00> : vector<8x512xf32>
      %12 = tpu.matmul %10, %11, %cst_12 {dimension_numbers = #tpu.dot_dimension_numbers<[1], [0], [0], [1], [0, 0, 1, 1], [], []>} : vector<8x160xbf16>, vector<160x512xbf16>, vector<8x512xf32> -> vector<8x512xf32>
      %c0_13 = arith.constant 0 : index
      %c0_14 = arith.constant 0 : index
      %13 = vector.load %arg5[%c0_13, %c0_14] : memref<1x512xf32, #tpu.memory_space<vmem>>, vector<1x512xf32>
      %14 = vector.broadcast %13 : vector<1x512xf32> to vector<8x512xf32>
      %15 = arith.addf %12, %14 : vector<8x512xf32>
      %c0_15 = arith.constant 0 : index
      %c0_16 = arith.constant 0 : index
      %c0_17 = arith.constant 0 : index
      %16 = vector.load %arg3[%c0_15, %c0_16, %c0_17] : memref<2x8x128xf32, #tpu.memory_space<vmem>>, vector<1x8x128xf32>
      %17 = vector.shape_cast %16 : vector<1x8x128xf32> to vector<8x128xf32>
      %18 = vector.extract_strided_slice %15 {offsets = [0, 0], sizes = [8, 128], strides = [1, 1]} : vector<8x512xf32> to vector<8x128xf32>
      %19 = arith.negf %18 : vector<8x128xf32>
      %20 = math.exp %19 : vector<8x128xf32>
      %cst_18 = arith.constant 1.000000e+00 : f32
      %21 = vector.broadcast %cst_18 : f32 to vector<8x128xf32>
      %22 = arith.addf %21, %20 : vector<8x128xf32>
      %23 = arith.divf %21, %22 : vector<8x128xf32>
      %24 = vector.extract_strided_slice %15 {offsets = [0, 128], sizes = [8, 128], strides = [1, 1]} : vector<8x512xf32> to vector<8x128xf32>
      %25 = arith.negf %24 : vector<8x128xf32>
      %26 = math.exp %25 : vector<8x128xf32>
      %cst_19 = arith.constant 1.000000e+00 : f32
      %27 = vector.broadcast %cst_19 : f32 to vector<8x128xf32>
      %28 = arith.addf %27, %26 : vector<8x128xf32>
      %29 = arith.divf %27, %28 : vector<8x128xf32>
      %30 = vector.extract_strided_slice %15 {offsets = [0, 256], sizes = [8, 128], strides = [1, 1]} : vector<8x512xf32> to vector<8x128xf32>
      %31 = math.tanh %30 : vector<8x128xf32>
      %32 = vector.extract_strided_slice %15 {offsets = [0, 384], sizes = [8, 128], strides = [1, 1]} : vector<8x512xf32> to vector<8x128xf32>
      %33 = arith.negf %32 : vector<8x128xf32>
      %34 = math.exp %33 : vector<8x128xf32>
      %cst_20 = arith.constant 1.000000e+00 : f32
      %35 = vector.broadcast %cst_20 : f32 to vector<8x128xf32>
      %36 = arith.addf %35, %34 : vector<8x128xf32>
      %37 = arith.divf %35, %36 : vector<8x128xf32>
      %38 = arith.mulf %29, %17 : vector<8x128xf32>
      %39 = arith.mulf %23, %31 : vector<8x128xf32>
      %40 = arith.addf %38, %39 : vector<8x128xf32>
      %41 = math.tanh %40 : vector<8x128xf32>
      %42 = arith.mulf %37, %41 : vector<8x128xf32>
      %c1 = arith.constant 1 : index
      %c0_21 = arith.constant 0 : index
      %c0_22 = arith.constant 0 : index
      %43 = vector.load %arg2[%c1, %c0_21, %c0_22] : memref<2x8x128xf32, #tpu.memory_space<vmem>>, vector<1x8x128xf32>
      %44 = vector.shape_cast %43 : vector<1x8x128xf32> to vector<8x128xf32>
      %45 = tpu.concatenate %42, %44 in 1 : vector<8x128xf32>, vector<8x128xf32> -> vector<8x256xf32>
      %46 = arith.truncf %45 : vector<8x256xf32> to vector<8x256xbf16>
      %c0_23 = arith.constant 0 : index
      %c0_24 = arith.constant 0 : index
      %47 = vector.load %arg6[%c0_23, %c0_24] : memref<256x512xbf16, #tpu.memory_space<vmem>>, vector<256x512xbf16>
      %cst_25 = arith.constant dense<0.000000e+00> : vector<8x512xf32>
      %48 = tpu.matmul %46, %47, %cst_25 {dimension_numbers = #tpu.dot_dimension_numbers<[1], [0], [0], [1], [0, 0, 1, 1], [], []>} : vector<8x256xbf16>, vector<256x512xbf16>, vector<8x512xf32> -> vector<8x512xf32>
      %c0_26 = arith.constant 0 : index
      %c0_27 = arith.constant 0 : index
      %49 = vector.load %arg7[%c0_26, %c0_27] : memref<1x512xf32, #tpu.memory_space<vmem>>, vector<1x512xf32>
      %50 = vector.broadcast %49 : vector<1x512xf32> to vector<8x512xf32>
      %51 = arith.addf %48, %50 : vector<8x512xf32>
      %c1_28 = arith.constant 1 : index
      %c0_29 = arith.constant 0 : index
      %c0_30 = arith.constant 0 : index
      %52 = vector.load %arg3[%c1_28, %c0_29, %c0_30] : memref<2x8x128xf32, #tpu.memory_space<vmem>>, vector<1x8x128xf32>
      %53 = vector.shape_cast %52 : vector<1x8x128xf32> to vector<8x128xf32>
      %54 = vector.extract_strided_slice %51 {offsets = [0, 0], sizes = [8, 128], strides = [1, 1]} : vector<8x512xf32> to vector<8x128xf32>
      %55 = arith.negf %54 : vector<8x128xf32>
      %56 = math.exp %55 : vector<8x128xf32>
      %cst_31 = arith.constant 1.000000e+00 : f32
      %57 = vector.broadcast %cst_31 : f32 to vector<8x128xf32>
      %58 = arith.addf %57, %56 : vector<8x128xf32>
      %59 = arith.divf %57, %58 : vector<8x128xf32>
      %60 = vector.extract_strided_slice %51 {offsets = [0, 128], sizes = [8, 128], strides = [1, 1]} : vector<8x512xf32> to vector<8x128xf32>
      %61 = arith.negf %60 : vector<8x128xf32>
      %62 = math.exp %61 : vector<8x128xf32>
      %cst_32 = arith.constant 1.000000e+00 : f32
      %63 = vector.broadcast %cst_32 : f32 to vector<8x128xf32>
      %64 = arith.addf %63, %62 : vector<8x128xf32>
      %65 = arith.divf %63, %64 : vector<8x128xf32>
      %66 = vector.extract_strided_slice %51 {offsets = [0, 256], sizes = [8, 128], strides = [1, 1]} : vector<8x512xf32> to vector<8x128xf32>
      %67 = math.tanh %66 : vector<8x128xf32>
      %68 = vector.extract_strided_slice %51 {offsets = [0, 384], sizes = [8, 128], strides = [1, 1]} : vector<8x512xf32> to vector<8x128xf32>
      %69 = arith.negf %68 : vector<8x128xf32>
      %70 = math.exp %69 : vector<8x128xf32>
      %cst_33 = arith.constant 1.000000e+00 : f32
      %71 = vector.broadcast %cst_33 : f32 to vector<8x128xf32>
      %72 = arith.addf %71, %70 : vector<8x128xf32>
      %73 = arith.divf %71, %72 : vector<8x128xf32>
      %74 = arith.mulf %65, %53 : vector<8x128xf32>
      %75 = arith.mulf %59, %67 : vector<8x128xf32>
      %76 = arith.addf %74, %75 : vector<8x128xf32>
      %77 = math.tanh %76 : vector<8x128xf32>
      %78 = arith.mulf %73, %77 : vector<8x128xf32>
      %79 = arith.truncf %78 : vector<8x128xf32> to vector<8x128xbf16>
      %c0_34 = arith.constant 0 : index
      %c0_35 = arith.constant 0 : index
      %80 = vector.load %arg13[%c0_34, %c0_35] : memref<8x128xbf16, #tpu.memory_space<vmem>>, vector<8x128xbf16>
      tpu.vector_store %arg13[%c0_34, %c0_35], %79 {strides = array<i32>} : memref<8x128xbf16, #tpu.memory_space<vmem>>, vector<8x128xbf16>,
      %c0_36 = arith.constant 0 : index
      %c0_37 = arith.constant 0 : index
      %c0_38 = arith.constant 0 : index
      %81 = vector.load %arg11[%c0_36, %c0_37, %c0_38] : memref<2x8x128xf32, #tpu.memory_space<vmem>>, vector<1x8x128xf32>
      %82 = vector.shape_cast %81 : vector<1x8x128xf32> to vector<8x128xf32>
      %83 = vector.shape_cast %42 : vector<8x128xf32> to vector<1x8x128xf32>
      tpu.vector_store %arg11[%c0_36, %c0_37, %c0_38], %83 {strides = array<i32>} : memref<2x8x128xf32, #tpu.memory_space<vmem>>, vector<1x8x128xf32>,
      %c1_39 = arith.constant 1 : index
      %c0_40 = arith.constant 0 : index
      %c0_41 = arith.constant 0 : index
      %84 = vector.load %arg11[%c1_39, %c0_40, %c0_41] : memref<2x8x128xf32, #tpu.memory_space<vmem>>, vector<1x8x128xf32>
      %85 = vector.shape_cast %84 : vector<1x8x128xf32> to vector<8x128xf32>
      %86 = vector.shape_cast %78 : vector<8x128xf32> to vector<1x8x128xf32>
      tpu.vector_store %arg11[%c1_39, %c0_40, %c0_41], %86 {strides = array<i32>} : memref<2x8x128xf32, #tpu.memory_space<vmem>>, vector<1x8x128xf32>,
      %c0_42 = arith.constant 0 : index
      %c0_43 = arith.constant 0 : index
      %c0_44 = arith.constant 0 : index
      %87 = vector.load %arg12[%c0_42, %c0_43, %c0_44] : memref<2x8x128xf32, #tpu.memory_space<vmem>>, vector<1x8x128xf32>
      %88 = vector.shape_cast %87 : vector<1x8x128xf32> to vector<8x128xf32>
      %89 = vector.shape_cast %40 : vector<8x128xf32> to vector<1x8x128xf32>
      tpu.vector_store %arg12[%c0_42, %c0_43, %c0_44], %89 {strides = array<i32>} : memref<2x8x128xf32, #tpu.memory_space<vmem>>, vector<1x8x128xf32>,
      %c1_45 = arith.constant 1 : index
      %c0_46 = arith.constant 0 : index
      %c0_47 = arith.constant 0 : index
      %90 = vector.load %arg12[%c1_45, %c0_46, %c0_47] : memref<2x8x128xf32, #tpu.memory_space<vmem>>, vector<1x8x128xf32>
      %91 = vector.shape_cast %90 : vector<1x8x128xf32> to vector<8x128xf32>
      %92 = vector.shape_cast %76 : vector<8x128xf32> to vector<1x8x128xf32>
      tpu.vector_store %arg12[%c1_45, %c0_46, %c0_47], %92 {strides = array<i32>} : memref<2x8x128xf32, #tpu.memory_space<vmem>>, vector<1x8x128xf32>,
    } else {
    }
    %c0 = arith.constant 0 : index
    %c0_1 = arith.constant 0 : index
    %3 = vector.load %arg13[%c0, %c0_1] : memref<8x128xbf16, #tpu.memory_space<vmem>>, vector<8x128xbf16>
    %c0_2 = arith.constant 0 : index
    %c0_3 = arith.constant 0 : index
    %4 = vector.load %arg8[%c0_2, %c0_3] : memref<128x128xbf16, #tpu.memory_space<vmem>>, vector<128x128xbf16>
    %cst = arith.constant dense<0.000000e+00> : vector<8x128xf32>
    %5 = tpu.matmul %3, %4, %cst {dimension_numbers = #tpu.dot_dimension_numbers<[1], [0], [0], [1], [0, 0, 1, 1], [], []>} : vector<8x128xbf16>, vector<128x128xbf16>, vector<8x128xf32> -> vector<8x128xf32>
    %c0_4 = arith.constant 0 : index
    %c0_5 = arith.constant 0 : index
    %6 = vector.load %arg9[%c0_4, %c0_5] : memref<1x128xf32, #tpu.memory_space<vmem>>, vector<1x128xf32>
    %7 = vector.broadcast %6 : vector<1x128xf32> to vector<8x128xf32>
    %8 = arith.addf %5, %7 : vector<8x128xf32>
    %c0_6 = arith.constant 0 : index
    %c0_7 = arith.constant 0 : index
    %9 = vector.load %arg10[%c0_6, %c0_7] : memref<8x128xf32, #tpu.memory_space<vmem>>, vector<8x128xf32>
    tpu.vector_store %arg10[%c0_6, %c0_7], %8 {strides = array<i32>} : memref<8x128xf32, #tpu.memory_space<vmem>>, vector<8x128xf32>,
    return
  }
  func.func @transform_0(%arg0: i32) -> (i32, i32) {
    %c0_i32 = arith.constant 0 : i32
    %c0_i32_0 = arith.constant 0 : i32
    %c0_i32_1 = arith.constant 0 : i32
    return %c0_i32, %c0_i32_0 : i32, i32
  }
  func.func @transform_1(%arg0: i32) -> (i32, i32, i32) {
    %c0_i32 = arith.constant 0 : i32
    %c0_i32_0 = arith.constant 0 : i32
    %c0_i32_1 = arith.constant 0 : i32
    %c0_i32_2 = arith.constant 0 : i32
    return %c0_i32, %c0_i32_0, %c0_i32_1 : i32, i32, i32
  }
  func.func @transform_2(%arg0: i32) -> (i32, i32, i32) {
    %c0_i32 = arith.constant 0 : i32
    %c0_i32_0 = arith.constant 0 : i32
    %c0_i32_1 = arith.constant 0 : i32
    %c0_i32_2 = arith.constant 0 : i32
    return %c0_i32, %c0_i32_0, %c0_i32_1 : i32, i32, i32
  }
  func.func @transform_3(%arg0: i32) -> (i32, i32) {
    %c0_i32 = arith.constant 0 : i32
    %c0_i32_0 = arith.constant 0 : i32
    %c0_i32_1 = arith.constant 0 : i32
    return %c0_i32, %c0_i32_0 : i32, i32
  }
  func.func @transform_4(%arg0: i32) -> (i32, i32) {
    %c0_i32 = arith.constant 0 : i32
    %c0_i32_0 = arith.constant 0 : i32
    %c0_i32_1 = arith.constant 0 : i32
    return %c0_i32, %c0_i32_0 : i32, i32
  }
  func.func @transform_5(%arg0: i32) -> (i32, i32) {
    %c0_i32 = arith.constant 0 : i32
    %c0_i32_0 = arith.constant 0 : i32
    %c0_i32_1 = arith.constant 0 : i32
    return %c0_i32, %c0_i32_0 : i32, i32
  }
  func.func @transform_6(%arg0: i32) -> (i32, i32) {
    %c0_i32 = arith.constant 0 : i32
    %c0_i32_0 = arith.constant 0 : i32
    %c0_i32_1 = arith.constant 0 : i32
    return %c0_i32, %c0_i32_0 : i32, i32
  }
  func.func @transform_7(%arg0: i32) -> (i32, i32) {
    %c0_i32 = arith.constant 0 : i32
    %c0_i32_0 = arith.constant 0 : i32
    return %c0_i32, %arg0 : i32, i32
  }
  func.func @transform_8(%arg0: i32) -> (i32, i32) {
    %c0_i32 = arith.constant 0 : i32
    %c0_i32_0 = arith.constant 0 : i32
    return %c0_i32, %arg0 : i32, i32
  }
  func.func @transform_9(%arg0: i32) -> (i32, i32) {
    %c0_i32 = arith.constant 0 : i32
    %c0_i32_0 = arith.constant 0 : i32
    return %c0_i32, %arg0 : i32, i32
  }
  func.func @transform_10(%arg0: i32) -> (i32, i32, i32) {
    %c0_i32 = arith.constant 0 : i32
    %c0_i32_0 = arith.constant 0 : i32
    %c0_i32_1 = arith.constant 0 : i32
    %c0_i32_2 = arith.constant 0 : i32
    return %c0_i32, %c0_i32_0, %c0_i32_1 : i32, i32, i32
  }
  func.func @transform_11(%arg0: i32) -> (i32, i32, i32) {
    %c0_i32 = arith.constant 0 : i32
    %c0_i32_0 = arith.constant 0 : i32
    %c0_i32_1 = arith.constant 0 : i32
    %c0_i32_2 = arith.constant 0 : i32
    return %c0_i32, %c0_i32_0, %c0_i32_1 : i32, i32, i32
  }
}

</mosaic_0001>

<llo_original>
// kernel: decoder_forward.1
$region0: #{decoder_forward.1}
  #allocation0 [shape = 'u32[]', space=smem, size = 0x4, offset = 0x4, fixed_abs, tag = 'smem constant byte address 0x4 - core index']
  #allocation1 [shape = 'u32[144,128]{1,0:T(1,128)}', space=vmem, size = 0x12000, scoped, tag = 'internal scratch']
  #allocation2 [shape = 'bf16[8,128]{1,0:T(8,128)(2,1)}', space=vmem, size = 0x800, scoped, tag = 'scratch operand']
  %s0 = inlined_call_operand.hbm [shape: bf16[8,160], index: 0, kind: input, shape index: {}]
  %s1 = inlined_call_operand.hbm [shape: f32[2,8,128], index: 1, kind: input, shape index: {}, may-alias: {1,10}]
  %s2 = inlined_call_operand.hbm [shape: f32[2,8,128], index: 2, kind: input, shape index: {}, may-alias: {2,11}]
  %s3 = inlined_call_operand.hbm [shape: bf16[160,512], index: 3, kind: input, shape index: {}]
  %s4 = inlined_call_operand.hbm [shape: f32[1,512], index: 4, kind: input, shape index: {}]
  %s5 = inlined_call_operand.hbm [shape: bf16[256,512], index: 5, kind: input, shape index: {}]
  %s6 = inlined_call_operand.hbm [shape: f32[1,512], index: 6, kind: input, shape index: {}]
  %s7 = inlined_call_operand.hbm [shape: bf16[128,512], index: 7, kind: input, shape index: {}]
  %s8 = inlined_call_operand.hbm [shape: f32[1,512], index: 8, kind: input, shape index: {}]
  %s9 = inlined_call_operand.hbm [shape: f32[8,512], index: 9, kind: output, shape index: {0}]
  %s10 = inlined_call_operand.hbm [shape: f32[2,8,128], index: 10, kind: output, shape index: {1}, may-alias: {1,10}]
  %s11 = inlined_call_operand.hbm [shape: f32[2,8,128], index: 11, kind: output, shape index: {2}, may-alias: {2,11}]
  %12 = xla_tuple %s9, %s10, %s11
  %s13 = sld [smem:[#allocation0]]
  $region125: #{decoder_forward.1} parent=0
    _
  %s15 = ssub.s32 1, %s13
  %s16 = scalar_select 0, %s15, %s13
  $region1: #{decoder_forward.1} parent=0
    #allocation3 [shape = 'u8[4096]{0}', space=vmem, size = 0x1000, scoped, tag = 'input window, operand 0, single buffered']
    #allocation4 [shape = 's32[2]{0}', space=sflag, size = 0x8, scoped, tag = 'scoped memory for decoder_forward.1']
    #allocation5 [shape = 's32[2]{0}', space=sflag, size = 0x8, scoped, tag = 'scoped memory for decoder_forward.1']
    #allocation6 [shape = 'u8[8192]{0}', space=vmem, size = 0x2000, scoped, tag = 'input window, operand 1, single buffered']
    #allocation7 [shape = 's32[1]{0}', space=sflag, size = 0x4, scoped, tag = 'scoped memory for decoder_forward.1']
    #allocation8 [shape = 'u8[8192]{0}', space=vmem, size = 0x2000, scoped, tag = 'input window, operand 2, single buffered']
    #allocation9 [shape = 'u8[163840]{0}', space=vmem, size = 0x28000, scoped, tag = 'input window, operand 3, single buffered']
    #allocation10 [shape = 's32[1]{0}', space=sflag, size = 0x4, scoped, tag = 'scoped memory for decoder_forward.1']
    #allocation11 [shape = 'u8[2048]{0}', space=vmem, size = 0x800, scoped, tag = 'input window, operand 4, single buffered']
    #allocation12 [shape = 'u8[262144]{0}', space=vmem, size = 0x40000, scoped, tag = 'input window, operand 5, single buffered']
    #allocation13 [shape = 's32[1]{0}', space=sflag, size = 0x4, scoped, tag = 'scoped memory for decoder_forward.1']
    #allocation14 [shape = 'u8[2048]{0}', space=vmem, size = 0x800, scoped, tag = 'input window, operand 6, single buffered']
    #allocation15 [shape = 'u8[65536]{0}', space=vmem, size = 0x10000, scoped, tag = 'input window, operand 7']
    #allocation16 [shape = 's32[2]{0}', space=sflag, size = 0x8, scoped, tag = 'scoped memory for decoder_forward.1']
    #allocation17 [shape = 'u8[1024]{0}', space=vmem, size = 0x400, scoped, tag = 'input window, operand 8']
    #allocation18 [shape = 'u8[8192]{0}', space=vmem, size = 0x2000, scoped, tag = 'output window, operand 0']
    #allocation19 [shape = 'u8[8192]{0}', space=vmem, size = 0x2000, scoped, tag = 'output window, operand 1, single buffered']
    #allocation20 [shape = 's32[1]{0}', space=sflag, size = 0x4, scoped, tag = 'scoped memory for decoder_forward.1']
    #allocation21 [shape = 'u8[8192]{0}', space=vmem, size = 0x2000, scoped, tag = 'output window, operand 2, single buffered']
    %17 = vsyncpa [#allocation4], 0
    %18 = vsyncpa [#allocation7], 0
    %19 = vsyncpa [#allocation10], 0
    %20 = vsyncpa [#allocation13], 0
    %21 = vsyncpa [#allocation16], 0
    %s22 = scalar_lea.sflag [#allocation16], 1
    %23 = vsyncpa %s22, 0
    %24 = vsyncpa [#allocation5], 0
    %s25 = scalar_lea.sflag [#allocation5], 1
    %26 = vsyncpa %s25, 0
    %27 = vsyncpa [#allocation20], 0
    loop: start=0, step=1, limit=6
    $region2: #{decoder_forward.1} parent=1 // loop_pre_header
      _
    $region3: #{decoder_forward.1} parent=1 // loop_header
      %s29 = sphi 0, %s33
      %p30 = scmp.ge.s32.totalorder %s29, 6
      %s37 = sphi 0, %s37
      %s39 = sphi 0, %s37
      %s40 = sphi 0, %s39
      %s54 = sphi 0, %s40
      %s58 = sphi 0, %s58
      %s60 = sphi 0, %s58
      %s61 = sphi 0, %s60
      %s75 = sphi 0, %s61
      %s79 = sphi 0, %s79
      %s81 = sphi 0, %s79
      %s82 = sphi 0, %s81
      %s96 = sphi 0, %s82
      %s100 = sphi 0, %s100
      %s102 = sphi 0, %s100
      %s103 = sphi 0, %s102
      %s117 = sphi 0, %s103
      %s121 = sphi 0, %s121
      %s123 = sphi 0, %s121
      %s124 = sphi 0, %s123
      %s138 = sphi 0, %s124
      %s142 = sphi 0, %s142
      %s144 = sphi 0, %s142
      %s145 = sphi 0, %s144
      %s159 = sphi 0, %s145
      %s163 = sphi 0, %s163
      %s165 = sphi 0, %s163
      %s166 = sphi 0, %s165
      %s180 = sphi 0, %s166
      %s186 = sphi 0, %s188
      %s189 = sphi 0, %s186
      %s190 = sphi 0, %s189
      %s206 = sphi 0, %s190
      %s212 = sphi 0, %s214
      %s215 = sphi 0, %s212
      %s216 = sphi 0, %s215
      %s232 = sphi 0, %s216
      %s238 = sphi 0, %s240
      %s241 = sphi 0, %s238
      %s242 = sphi 0, %s241
      %s258 = sphi 0, %s242
      %s262 = sphi 0, %s262
      %s264 = sphi 0, %s262
      %s265 = sphi 0, %s264
      %s279 = sphi 0, %s265
      %s283 = sphi 0, %s283
      %s285 = sphi 0, %s283
      %s286 = sphi 0, %s285
      %s300 = sphi 0, %s286
    $region4: #{decoder_forward.1} parent=1 // loop_header_branch
      %32 = sbr.rel (%p30) target = $region8
    $region5: #{decoder_forward.1} parent=1 // loop_body
      %s34 = ssub.s32 %s29, 1
      %s35 = ssub.s32 %s29, 2
      %s36 = sadd.s32 %s29, 1
      %s38 = sadd.s32 %s37, 1
      %p41 = scmp.eq.s32.totalorder %s29, 3
      %p42 = scmp.ne.s32.totalorder %s37, %s39
      %p43 = scmp.eq.s32.totalorder %s29, 0
      %p44 = por %p42, %p43
      %p45 = scmp.ne.s32.totalorder %s37, %s39
      %p46 = scmp.eq.s32.totalorder %s34, 3
      %p47 = por %p45, %p46
      %p48 = scmp.ne.s32.totalorder %s39, %s40
      %p49 = scmp.eq.s32.totalorder %s34, 0
      %p50 = por %p48, %p49
      %p51 = scmp.ne.s32.totalorder %s39, %s40
      %p52 = scmp.eq.s32.totalorder %s35, 3
      %p53 = por %p51, %p52
      %p55 = scmp.ne.s32.totalorder %s40, %s54
      %p56 = scmp.eq.s32.totalorder %s35, 0
      %p57 = por %p55, %p56
      %s59 = sadd.s32 %s58, 1
      %p62 = scmp.eq.s32.totalorder %s29, 3
      %p63 = scmp.ne.s32.totalorder %s58, %s60
      %p64 = scmp.eq.s32.totalorder %s29, 0
      %p65 = por %p63, %p64
      %p66 = scmp.ne.s32.totalorder %s58, %s60
      %p67 = scmp.eq.s32.totalorder %s34, 3
      %p68 = por %p66, %p67
      %p69 = scmp.ne.s32.totalorder %s60, %s61
      %p70 = scmp.eq.s32.totalorder %s34, 0
      %p71 = por %p69, %p70
      %p72 = scmp.ne.s32.totalorder %s60, %s61
      %p73 = scmp.eq.s32.totalorder %s35, 3
      %p74 = por %p72, %p73
      %p76 = scmp.ne.s32.totalorder %s61, %s75
      %p77 = scmp.eq.s32.totalorder %s35, 0
      %p78 = por %p76, %p77
      %s80 = sadd.s32 %s79, 1
      %p83 = scmp.eq.s32.totalorder %s29, 3
      %p84 = scmp.ne.s32.totalorder %s79, %s81
      %p85 = scmp.eq.s32.totalorder %s29, 0
      %p86 = por %p84, %p85
      %p87 = scmp.ne.s32.totalorder %s79, %s81
      %p88 = scmp.eq.s32.totalorder %s34, 3
      %p89 = por %p87, %p88
      %p90 = scmp.ne.s32.totalorder %s81, %s82
      %p91 = scmp.eq.s32.totalorder %s34, 0
      %p92 = por %p90, %p91
      %p93 = scmp.ne.s32.totalorder %s81, %s82
      %p94 = scmp.eq.s32.totalorder %s35, 3
      %p95 = por %p93, %p94
      %p97 = scmp.ne.s32.totalorder %s82, %s96
      %p98 = scmp.eq.s32.totalorder %s35, 0
      %p99 = por %p97, %p98
      %s101 = sadd.s32 %s100, 1
      %p104 = scmp.eq.s32.totalorder %s29, 3
      %p105 = scmp.ne.s32.totalorder %s100, %s102
      %p106 = scmp.eq.s32.totalorder %s29, 0
      %p107 = por %p105, %p106
      %p108 = scmp.ne.s32.totalorder %s100, %s102
      %p109 = scmp.eq.s32.totalorder %s34, 3
      %p110 = por %p108, %p109
      %p111 = scmp.ne.s32.totalorder %s102, %s103
      %p112 = scmp.eq.s32.totalorder %s34, 0
      %p113 = por %p111, %p112
      %p114 = scmp.ne.s32.totalorder %s102, %s103
      %p115 = scmp.eq.s32.totalorder %s35, 3
      %p116 = por %p114, %p115
      %p118 = scmp.ne.s32.totalorder %s103, %s117
      %p119 = scmp.eq.s32.totalorder %s35, 0
      %p120 = por %p118, %p119
      %s122 = sadd.s32 %s121, 1
      %p125 = scmp.eq.s32.totalorder %s29, 3
      %p126 = scmp.ne.s32.totalorder %s121, %s123
      %p127 = scmp.eq.s32.totalorder %s29, 0
      %p128 = por %p126, %p127
      %p129 = scmp.ne.s32.totalorder %s121, %s123
      %p130 = scmp.eq.s32.totalorder %s34, 3
      %p131 = por %p129, %p130
      %p132 = scmp.ne.s32.totalorder %s123, %s124
      %p133 = scmp.eq.s32.totalorder %s34, 0
      %p134 = por %p132, %p133
      %p135 = scmp.ne.s32.totalorder %s123, %s124
      %p136 = scmp.eq.s32.totalorder %s35, 3
      %p137 = por %p135, %p136
      %p139 = scmp.ne.s32.totalorder %s124, %s138
      %p140 = scmp.eq.s32.totalorder %s35, 0
      %p141 = por %p139, %p140
      %s143 = sadd.s32 %s142, 1
      %p146 = scmp.eq.s32.totalorder %s29, 3
      %p147 = scmp.ne.s32.totalorder %s142, %s144
      %p148 = scmp.eq.s32.totalorder %s29, 0
      %p149 = por %p147, %p148
      %p150 = scmp.ne.s32.totalorder %s142, %s144
      %p151 = scmp.eq.s32.totalorder %s34, 3
      %p152 = por %p150, %p151
      %p153 = scmp.ne.s32.totalorder %s144, %s145
      %p154 = scmp.eq.s32.totalorder %s34, 0
      %p155 = por %p153, %p154
      %p156 = scmp.ne.s32.totalorder %s144, %s145
      %p157 = scmp.eq.s32.totalorder %s35, 3
      %p158 = por %p156, %p157
      %p160 = scmp.ne.s32.totalorder %s145, %s159
      %p161 = scmp.eq.s32.totalorder %s35, 0
      %p162 = por %p160, %p161
      %s164 = sadd.s32 %s163, 1
      %p167 = scmp.eq.s32.totalorder %s29, 3
      %p168 = scmp.ne.s32.totalorder %s163, %s165
      %p169 = scmp.eq.s32.totalorder %s29, 0
      %p170 = por %p168, %p169
      %p171 = scmp.ne.s32.totalorder %s163, %s165
      %p172 = scmp.eq.s32.totalorder %s34, 3
      %p173 = por %p171, %p172
      %p174 = scmp.ne.s32.totalorder %s165, %s166
      %p175 = scmp.eq.s32.totalorder %s34, 0
      %p176 = por %p174, %p175
      %p177 = scmp.ne.s32.totalorder %s165, %s166
      %p178 = scmp.eq.s32.totalorder %s35, 3
      %p179 = por %p177, %p178
      %p181 = scmp.ne.s32.totalorder %s166, %s180
      %p182 = scmp.eq.s32.totalorder %s35, 0
      %p183 = por %p181, %p182
      %s184 = ssub.s32 %s29, %s36
      %p185 = scmp.eq.s32.totalorder %s184, 0
      %s187 = sadd.s32 %s186, 1
      %s188 = scalar_select %p185, %s186, %s187
      %p191 = pneg %p185
      %p192 = scmp.eq.s32.totalorder %s29, 3
      %p193 = por %p191, %p192
      %p194 = scmp.ne.s32.totalorder %s186, %s189
      %p195 = scmp.eq.s32.totalorder %s29, 0
      %p196 = por %p194, %p195
      %p197 = scmp.ne.s32.totalorder %s186, %s189
      %p198 = scmp.eq.s32.totalorder %s34, 3
      %p199 = por %p197, %p198
      %p200 = scmp.ne.s32.totalorder %s189, %s190
      %p201 = scmp.eq.s32.totalorder %s34, 0
      %p202 = por %p200, %p201
      %p203 = scmp.ne.s32.totalorder %s189, %s190
      %p204 = scmp.eq.s32.totalorder %s35, 3
      %p205 = por %p203, %p204
      %p207 = scmp.ne.s32.totalorder %s190, %s206
      %p208 = scmp.eq.s32.totalorder %s35, 0
      %p209 = por %p207, %p208
      %s210 = ssub.s32 %s29, %s36
      %p211 = scmp.eq.s32.totalorder %s210, 0
      %s213 = sadd.s32 %s212, 1
      %s214 = scalar_select %p211, %s212, %s213
      %p217 = pneg %p211
      %p218 = scmp.eq.s32.totalorder %s29, 3
      %p219 = por %p217, %p218
      %p220 = scmp.ne.s32.totalorder %s212, %s215
      %p221 = scmp.eq.s32.totalorder %s29, 0
      %p222 = por %p220, %p221
      %p223 = scmp.ne.s32.totalorder %s212, %s215
      %p224 = scmp.eq.s32.totalorder %s34, 3
      %p225 = por %p223, %p224
      %p226 = scmp.ne.s32.totalorder %s215, %s216
      %p227 = scmp.eq.s32.totalorder %s34, 0
      %p228 = por %p226, %p227
      %p229 = scmp.ne.s32.totalorder %s215, %s216
      %p230 = scmp.eq.s32.totalorder %s35, 3
      %p231 = por %p229, %p230
      %p233 = scmp.ne.s32.totalorder %s216, %s232
      %p234 = scmp.eq.s32.totalorder %s35, 0
      %p235 = por %p233, %p234
      %s236 = ssub.s32 %s29, %s36
      %p237 = scmp.eq.s32.totalorder %s236, 0
      %s239 = sadd.s32 %s238, 1
      %s240 = scalar_select %p237, %s238, %s239
      %p243 = pneg %p237
      %p244 = scmp.eq.s32.totalorder %s29, 3
      %p245 = por %p243, %p244
      %p246 = scmp.ne.s32.totalorder %s238, %s241
      %p247 = scmp.eq.s32.totalorder %s29, 0
      %p248 = por %p246, %p247
      %p249 = scmp.ne.s32.totalorder %s238, %s241
      %p250 = scmp.eq.s32.totalorder %s34, 3
      %p251 = por %p249, %p250
      %p252 = scmp.ne.s32.totalorder %s241, %s242
      %p253 = scmp.eq.s32.totalorder %s34, 0
      %p254 = por %p252, %p253
      %p255 = scmp.ne.s32.totalorder %s241, %s242
      %p256 = scmp.eq.s32.totalorder %s35, 3
      %p257 = por %p255, %p256
      %p259 = scmp.ne.s32.totalorder %s242, %s258
      %p260 = scmp.eq.s32.totalorder %s35, 0
      %p261 = por %p259, %p260
      %s263 = sadd.s32 %s262, 1
      %p266 = scmp.eq.s32.totalorder %s29, 3
      %p267 = scmp.ne.s32.totalorder %s262, %s264
      %p268 = scmp.eq.s32.totalorder %s29, 0
      %p269 = por %p267, %p268
      %p270 = scmp.ne.s32.totalorder %s262, %s264
      %p271 = scmp.eq.s32.totalorder %s34, 3
      %p272 = por %p270, %p271
      %p273 = scmp.ne.s32.totalorder %s264, %s265
      %p274 = scmp.eq.s32.totalorder %s34, 0
      %p275 = por %p273, %p274
      %p276 = scmp.ne.s32.totalorder %s264, %s265
      %p277 = scmp.eq.s32.totalorder %s35, 3
      %p278 = por %p276, %p277
      %p280 = scmp.ne.s32.totalorder %s265, %s279
      %p281 = scmp.eq.s32.totalorder %s35, 0
      %p282 = por %p280, %p281
      %s284 = sadd.s32 %s283, 1
      %p287 = scmp.eq.s32.totalorder %s29, 3
      %p288 = scmp.ne.s32.totalorder %s283, %s285
      %p289 = scmp.eq.s32.totalorder %s29, 0
      %p290 = por %p288, %p289
      %p291 = scmp.ne.s32.totalorder %s283, %s285
      %p292 = scmp.eq.s32.totalorder %s34, 3
      %p293 = por %p291, %p292
      %p294 = scmp.ne.s32.totalorder %s285, %s286
      %p295 = scmp.eq.s32.totalorder %s34, 0
      %p296 = por %p294, %p295
      %p297 = scmp.ne.s32.totalorder %s285, %s286
      %p298 = scmp.eq.s32.totalorder %s35, 3
      %p299 = por %p297, %p298
      %p301 = scmp.ne.s32.totalorder %s286, %s300
      %p302 = scmp.eq.s32.totalorder %s35, 0
      %p303 = por %p301, %p302
      %p304 = scmp.le.s32.totalorder 1, %s29
      %p305 = scmp.lt.s32.totalorder %s29, 5
      %p306 = pnand %p304, %p305
      %p307 = pneg %p306
      // Predicated region
      $region9: #{decoder_forward.1} parent=5 // pred_check
        _
      $region10: #{decoder_forward.1} parent=5 // pred_check_branch
        %309 = sbr.rel (%p306) target = $region12
      $region11: #{decoder_forward.1} parent=5 // pred_region
        %s310 = ssub.s32 %s29, 1
        // Predicated region
        $region13: #{decoder_forward.1} parent=11 // pred_check
          %p311 = pneg %p50
        $region14: #{decoder_forward.1} parent=11 // pred_check_branch
          %313 = sbr.rel (%p311) target = $region16
        $region15: #{decoder_forward.1} parent=11 // pred_region
          %s315 = ssub.s32 128, 128
          %316 = vsyncadd [#allocation4], %s315
          %s318 = sshll.u32 [#allocation3], 4
          %s319 = int_to_ptr.vmem [resolvable:$true] %s318
          %321 = dma.hbm_to_vmem [thread:$0]  %s0, 128, %s319, [#allocation4]
        $region16: #{decoder_forward.1} parent=11 // pred_fallthru
          _
        // Predicated region
        $region17: #{decoder_forward.1} parent=11 // pred_check
          %p322 = pneg %p71
        $region18: #{decoder_forward.1} parent=11 // pred_check_branch
          %324 = sbr.rel (%p322) target = $region20
        $region19: #{decoder_forward.1} parent=11 // pred_region
          %s326 = ssub.s32 256, 256
          %327 = vsyncadd [#allocation7], %s326
          %s328 = sshll.u32 [#allocation6], 4
          %s329 = int_to_ptr.vmem [resolvable:$true] %s328
          %334 = dma.hbm_to_vmem [thread:$0]  %s1, 256, %s329, [#allocation7], 128, 128, 8
        $region20: #{decoder_forward.1} parent=11 // pred_fallthru
          _
        // Predicated region
        $region21: #{decoder_forward.1} parent=11 // pred_check
          %p335 = pneg %p92
        $region22: #{decoder_forward.1} parent=11 // pred_check_branch
          %337 = sbr.rel (%p335) target = $region24
        $region23: #{decoder_forward.1} parent=11 // pred_region
          %s339 = ssub.s32 256, 256
          %340 = vsyncadd [#allocation7], %s339
          %s341 = sshll.u32 [#allocation8], 4
          %s342 = int_to_ptr.vmem [resolvable:$true] %s341
          %347 = dma.hbm_to_vmem [thread:$0]  %s2, 256, %s342, [#allocation7], 128, 128, 8
        $region24: #{decoder_forward.1} parent=11 // pred_fallthru
          _
        // Predicated region
        $region25: #{decoder_forward.1} parent=11 // pred_check
          %p348 = pneg %p113
        $region26: #{decoder_forward.1} parent=11 // pred_check_branch
          %350 = sbr.rel (%p348) target = $region28
        $region27: #{decoder_forward.1} parent=11 // pred_region
          %s352 = ssub.s32 5120, 5120
          %353 = vsyncadd [#allocation10], %s352
          %s354 = sshll.u32 [#allocation9], 4
          %s355 = int_to_ptr.vmem [resolvable:$true] %s354
          %360 = dma.hbm_to_vmem [thread:$0]  %s3, 5120, %s355, [#allocation10], 256, 256, 16
        $region28: #{decoder_forward.1} parent=11 // pred_fallthru
          _
        // Predicated region
        $region29: #{decoder_forward.1} parent=11 // pred_check
          %p361 = pneg %p134
        $region30: #{decoder_forward.1} parent=11 // pred_check_branch
          %363 = sbr.rel (%p361) target = $region32
        $region31: #{decoder_forward.1} parent=11 // pred_region
          %s365 = ssub.s32 64, 64
          %366 = vsyncadd [#allocation10], %s365
          %s368 = sshll.u32 [#allocation11], 4
          %s369 = int_to_ptr.vmem [resolvable:$true] %s368
          %371 = dma.hbm_to_vmem [thread:$0]  %s4, 64, %s369, [#allocation10]
        $region32: #{decoder_forward.1} parent=11 // pred_fallthru
          _
        // Predicated region
        $region33: #{decoder_forward.1} parent=11 // pred_check
          %p372 = pneg %p155
        $region34: #{decoder_forward.1} parent=11 // pred_check_branch
          %374 = sbr.rel (%p372) target = $region36
        $region35: #{decoder_forward.1} parent=11 // pred_region
          %s376 = ssub.s32 8192, 8192
          %377 = vsyncadd [#allocation13], %s376
          %s378 = sshll.u32 [#allocation12], 4
          %s379 = int_to_ptr.vmem [resolvable:$true] %s378
          %384 = dma.hbm_to_vmem [thread:$0]  %s5, 8192, %s379, [#allocation13], 256, 256, 16
        $region36: #{decoder_forward.1} parent=11 // pred_fallthru
          _
        // Predicated region
        $region37: #{decoder_forward.1} parent=11 // pred_check
          %p385 = pneg %p176
        $region38: #{decoder_forward.1} parent=11 // pred_check_branch
          %387 = sbr.rel (%p385) target = $region40
        $region39: #{decoder_forward.1} parent=11 // pred_region
          %s389 = ssub.s32 64, 64
          %390 = vsyncadd [#allocation13], %s389
          %s392 = sshll.u32 [#allocation14], 4
          %s393 = int_to_ptr.vmem [resolvable:$true] %s392
          %395 = dma.hbm_to_vmem [thread:$0]  %s6, 64, %s393, [#allocation13]
        $region40: #{decoder_forward.1} parent=11 // pred_fallthru
          _
      $region12: #{decoder_forward.1} parent=5 // pred_fallthru
        _
      %p396 = scmp.lt.s32.totalorder %s29, 4
      // Predicated region
      $region41: #{decoder_forward.1} parent=5 // pred_check
        %p397 = pneg %p396
      $region42: #{decoder_forward.1} parent=5 // pred_check_branch
        %399 = sbr.rel (%p397) target = $region44
      $region43: #{decoder_forward.1} parent=5 // pred_region
        // Predicated region
        $region45: #{decoder_forward.1} parent=43 // pred_check
          %p400 = pneg %p196
        $region46: #{decoder_forward.1} parent=43 // pred_check_branch
          %402 = sbr.rel (%p400) target = $region48
        $region47: #{decoder_forward.1} parent=43 // pred_region
          %s403 = sand.u32 %s29, 1
          %s404 = scalar_lea.sflag [#allocation16], %s403
          %s405 = sand.u32 %s186, 1
          %s406 = smul.addr %s405, 64
          %s407 = scalar_lea.vmem [#allocation15], %s406
          %s409 = ssub.s32 1024, 1024
          %410 = vsyncadd %s404, %s409
          %s411 = smul.addr %s29, 64
          %s412 = scalar_lea.hbm %s7, %s411
          %s413 = sshll.u32 %s407, 4
          %s414 = int_to_ptr.vmem [resolvable:$true] %s413
          %419 = dma.hbm_to_vmem [thread:$0]  %s412, 1024, %s414, %s404, 256, 64, 4
        $region48: #{decoder_forward.1} parent=43 // pred_fallthru
          _
        // Predicated region
        $region49: #{decoder_forward.1} parent=43 // pred_check
          %p420 = pneg %p222
        $region50: #{decoder_forward.1} parent=43 // pred_check_branch
          %422 = sbr.rel (%p420) target = $region52
        $region51: #{decoder_forward.1} parent=43 // pred_region
          %s423 = sand.u32 %s29, 1
          %s424 = scalar_lea.sflag [#allocation16], %s423
          %s425 = sand.u32 %s212, 1
          %s426 = scalar_lea.vmem [#allocation17], %s425
          %s428 = ssub.s32 16, 16
          %429 = vsyncadd %s424, %s428
          %s430 = smul.addr %s29, 16
          %s431 = scalar_lea.hbm %s8, %s430
          %s433 = sshll.u32 %s426, 4
          %s434 = int_to_ptr.vmem [resolvable:$true] %s433
          %436 = dma.hbm_to_vmem [thread:$0]  %s431, 16, %s434, %s424
        $region52: #{decoder_forward.1} parent=43 // pred_fallthru
          _
      $region44: #{decoder_forward.1} parent=5 // pred_fallthru
        _
      %p437 = scmp.le.s32.totalorder 1, %s29
      %p438 = scmp.lt.s32.totalorder %s29, 5
      %p439 = pnand %p437, %p438
      %p440 = pneg %p439
      // Predicated region
      $region53: #{decoder_forward.1} parent=5 // pred_check
        _
      $region54: #{decoder_forward.1} parent=5 // pred_check_branch
        %442 = sbr.rel (%p439) target = $region56
      $region55: #{decoder_forward.1} parent=5 // pred_region
        %s443 = ssub.s32 %s29, 1
        // Predicated region
        $region57: #{decoder_forward.1} parent=55 // pred_check
          %p444 = pneg %p50
        $region58: #{decoder_forward.1} parent=55 // pred_check_branch
          %446 = sbr.rel (%p444) target = $region60
        $region59: #{decoder_forward.1} parent=55 // pred_region
          %447 = dma.done [#allocation4], 128
        $region60: #{decoder_forward.1} parent=55 // pred_fallthru
          _
        // Predicated region
        $region61: #{decoder_forward.1} parent=55 // pred_check
          %p448 = pneg %p71
        $region62: #{decoder_forward.1} parent=55 // pred_check_branch
          %450 = sbr.rel (%p448) target = $region64
        $region63: #{decoder_forward.1} parent=55 // pred_region
          %451 = dma.done [#allocation7], 256
        $region64: #{decoder_forward.1} parent=55 // pred_fallthru
          _
        // Predicated region
        $region65: #{decoder_forward.1} parent=55 // pred_check
          %p452 = pneg %p92
        $region66: #{decoder_forward.1} parent=55 // pred_check_branch
          %454 = sbr.rel (%p452) target = $region68
        $region67: #{decoder_forward.1} parent=55 // pred_region
          %455 = dma.done [#allocation7], 256
        $region68: #{decoder_forward.1} parent=55 // pred_fallthru
          _
        // Predicated region
        $region69: #{decoder_forward.1} parent=55 // pred_check
          %p456 = pneg %p113
        $region70: #{decoder_forward.1} parent=55 // pred_check_branch
          %458 = sbr.rel (%p456) target = $region72
        $region71: #{decoder_forward.1} parent=55 // pred_region
          %459 = dma.done [#allocation10], 5120
        $region72: #{decoder_forward.1} parent=55 // pred_fallthru
          _
        // Predicated region
        $region73: #{decoder_forward.1} parent=55 // pred_check
          %p460 = pneg %p134
        $region74: #{decoder_forward.1} parent=55 // pred_check_branch
          %462 = sbr.rel (%p460) target = $region76
        $region75: #{decoder_forward.1} parent=55 // pred_region
          %463 = dma.done [#allocation10], 64
        $region76: #{decoder_forward.1} parent=55 // pred_fallthru
          _
        // Predicated region
        $region77: #{decoder_forward.1} parent=55 // pred_check
          %p464 = pneg %p155
        $region78: #{decoder_forward.1} parent=55 // pred_check_branch
          %466 = sbr.rel (%p464) target = $region80
        $region79: #{decoder_forward.1} parent=55 // pred_region
          %467 = dma.done [#allocation13], 8192
        $region80: #{decoder_forward.1} parent=55 // pred_fallthru
          _
        // Predicated region
        $region81: #{decoder_forward.1} parent=55 // pred_check
          %p468 = pneg %p176
        $region82: #{decoder_forward.1} parent=55 // pred_check_branch
          %470 = sbr.rel (%p468) target = $region84
        $region83: #{decoder_forward.1} parent=55 // pred_region
          %471 = dma.done [#allocation13], 64
        $region84: #{decoder_forward.1} parent=55 // pred_fallthru
          _
        %s472 = sand.u32 %s34, 1
        %s473 = scalar_lea.sflag [#allocation16], %s472
        %s474 = sand.u32 %s189, 1
        %s475 = smul.addr %s474, 64
        %s476 = scalar_lea.vmem [#allocation15], %s475
        // Predicated region
        $region85: #{decoder_forward.1} parent=55 // pred_check
          %p477 = pneg %p202
        $region86: #{decoder_forward.1} parent=55 // pred_check_branch
          %479 = sbr.rel (%p477) target = $region88
        $region87: #{decoder_forward.1} parent=55 // pred_region
          %480 = dma.done %s473, 1024
        $region88: #{decoder_forward.1} parent=55 // pred_fallthru
          _
        %s481 = sand.u32 %s34, 1
        %s482 = scalar_lea.sflag [#allocation16], %s481
        %s483 = sand.u32 %s215, 1
        %s484 = scalar_lea.vmem [#allocation17], %s483
        // Predicated region
        $region89: #{decoder_forward.1} parent=55 // pred_check
          %p485 = pneg %p228
        $region90: #{decoder_forward.1} parent=55 // pred_check_branch
          %487 = sbr.rel (%p485) target = $region92
        $region91: #{decoder_forward.1} parent=55 // pred_region
          %488 = dma.done %s482, 16
        $region92: #{decoder_forward.1} parent=55 // pred_fallthru
          _
        %p489 = pneg %p50
        %p490 = pneg %p47
        %p491 = pneg %p71
        %p492 = pneg %p68
        %p493 = pneg %p92
        %p494 = pneg %p89
        %p495 = pneg %p113
        %p496 = pneg %p110
        %p497 = pneg %p134
        %p498 = pneg %p131
        %p499 = pneg %p155
        %p500 = pneg %p152
        %p501 = pneg %p176
        %p502 = pneg %p173
        %s503 = sand.u32 %s34, 1
        %s504 = scalar_lea.sflag [#allocation16], %s503
        %s505 = sand.u32 %s189, 1
        %s506 = smul.addr %s505, 64
        %s507 = scalar_lea.vmem [#allocation15], %s506
        %p508 = pneg %p202
        %p509 = pneg %p199
        %s510 = sand.u32 %s34, 1
        %s511 = scalar_lea.sflag [#allocation16], %s510
        %s512 = sand.u32 %s215, 1
        %s513 = scalar_lea.vmem [#allocation17], %s512
        %p514 = pneg %p228
        %p515 = pneg %p225
        %p516 = pneg %p254
        %p517 = pneg %p251
        %s518 = sand.u32 %s241, 1
        %s519 = scalar_lea.sflag [#allocation5], %s518
        %s520 = sand.u32 %s241, 1
        %s521 = smul.addr %s520, 8
        %s522 = scalar_lea.vmem [#allocation18], %s521
        %p523 = pneg %p275
        %p524 = pneg %p272
        %p525 = pneg %p296
        %p526 = pneg %p293
        %p528 = scmp.eq.s32.totalorder %s34, 0
        // Predicated region
        $region93: #{decoder_forward.1} parent=55 // pred_check
          %p529 = pneg %p528
        $region94: #{decoder_forward.1} parent=55 // pred_check_branch
          %531 = sbr.rel (%p529) target = $region96
        $region95: #{decoder_forward.1} parent=55 // pred_region
          %v532 = vld [vmem:[#allocation3] sm:$0xff]
          %v533 = vld [vmem:[#allocation9] sm:$0xff]
          %v534 = vld [vmem:[#allocation9 + $0x8] sm:$0xff]
          %v535 = vld [vmem:[#allocation9 + $0x10] sm:$0xff]
          %v536 = vld [vmem:[#allocation9 + $0x18] sm:$0xff]
          %v537 = vld [vmem:[#allocation9 + $0x20] sm:$0xff]
          %v538 = vld [vmem:[#allocation9 + $0x28] sm:$0xff]
          %v539 = vld [vmem:[#allocation9 + $0x30] sm:$0xff]
          %v540 = vld [vmem:[#allocation9 + $0x38] sm:$0xff]
          %v541 = vld [vmem:[#allocation9 + $0x40] sm:$0xff]
          %v542 = vld [vmem:[#allocation9 + $0x48] sm:$0xff]
          %v543 = vld [vmem:[#allocation9 + $0x50] sm:$0xff]
          %v544 = vld [vmem:[#allocation9 + $0x58] sm:$0xff]
          %v545 = vld [vmem:[#allocation9 + $0x60] sm:$0xff]
          %v546 = vld [vmem:[#allocation9 + $0x68] sm:$0xff]
          %v547 = vld [vmem:[#allocation9 + $0x70] sm:$0xff]
          %v548 = vld [vmem:[#allocation9 + $0x78] sm:$0xff]
          %v549 = vld [vmem:[#allocation9 + $0x80] sm:$0xff]
          %v550 = vld [vmem:[#allocation9 + $0x88] sm:$0xff]
          %v551 = vld [vmem:[#allocation9 + $0x90] sm:$0xff]
          %v552 = vld [vmem:[#allocation9 + $0x98] sm:$0xff]
          %v553 = vld [vmem:[#allocation9 + $0xa0] sm:$0xff]
          %v554 = vld [vmem:[#allocation9 + $0xa8] sm:$0xff]
          %v555 = vld [vmem:[#allocation9 + $0xb0] sm:$0xff]
          %v556 = vld [vmem:[#allocation9 + $0xb8] sm:$0xff]
          %v557 = vld [vmem:[#allocation9 + $0xc0] sm:$0xff]
          %v558 = vld [vmem:[#allocation9 + $0xc8] sm:$0xff]
          %v559 = vld [vmem:[#allocation9 + $0xd0] sm:$0xff]
          %v560 = vld [vmem:[#allocation9 + $0xd8] sm:$0xff]
          %v561 = vld [vmem:[#allocation9 + $0xe0] sm:$0xff]
          %v562 = vld [vmem:[#allocation9 + $0xe8] sm:$0xff]
          %v563 = vld [vmem:[#allocation9 + $0xf0] sm:$0xff]
          %v564 = vld [vmem:[#allocation9 + $0xf8] sm:$0xff]
          %v565 = vld [vmem:[#allocation9 + $0x100] sm:$0xff]
          %v566 = vld [vmem:[#allocation9 + $0x108] sm:$0xff]
          %v567 = vld [vmem:[#allocation9 + $0x110] sm:$0xff]
          %v568 = vld [vmem:[#allocation9 + $0x118] sm:$0xff]
          %v569 = vld [vmem:[#allocation9 + $0x120] sm:$0xff]
          %v570 = vld [vmem:[#allocation9 + $0x128] sm:$0xff]
          %v571 = vld [vmem:[#allocation9 + $0x130] sm:$0xff]
          %v572 = vld [vmem:[#allocation9 + $0x138] sm:$0xff]
          %v573 = vld [vmem:[#allocation11] sm:$0xf]
          %v575 = vlaneseq
          %v576 = vshrl.u32 %v575, 7
          %v577 = vsub.s32 0, %v576
          %v578 = vrot.slane %v573, %v577
          %v579 = vlaneseq
          %v580 = vshrl.u32 %v579, 7
          %v581 = vsub.s32 1, %v580
          %v582 = vrot.slane %v573, %v581
          %v583 = vlaneseq
          %v584 = vshrl.u32 %v583, 7
          %v585 = vsub.s32 2, %v584
          %v586 = vrot.slane %v573, %v585
          %v587 = vlaneseq
          %v588 = vshrl.u32 %v587, 7
          %v589 = vsub.s32 3, %v588
          %v590 = vrot.slane %v573, %v589
          %v596 = vunpack.c.l.b16 %v532
          %v597 = vunpack.c.h.b16 %v532
          %v598 = vpack.c.b16 %v596, %v596
          %v599 = vpack.c.b16 %v597, %v597
          %v641 = vunpack.c.l.b16 %v533
          %v642 = vunpack.c.h.b16 %v533
          %v643 = vunpack.c.l.b16 %v534
          %v644 = vunpack.c.h.b16 %v534
          %v645 = vunpack.c.l.b16 %v535
          %v646 = vunpack.c.h.b16 %v535
          %v647 = vunpack.c.l.b16 %v536
          %v648 = vunpack.c.h.b16 %v536
          %v649 = vunpack.c.l.b16 %v537
          %v650 = vunpack.c.h.b16 %v537
          %v651 = vunpack.c.l.b16 %v538
          %v652 = vunpack.c.h.b16 %v538
          %v653 = vunpack.c.l.b16 %v539
          %v654 = vunpack.c.h.b16 %v539
          %v655 = vunpack.c.l.b16 %v540
          %v656 = vunpack.c.h.b16 %v540
          %v657 = vunpack.c.l.b16 %v541
          %v658 = vunpack.c.h.b16 %v541
          %v659 = vunpack.c.l.b16 %v542
          %v660 = vunpack.c.h.b16 %v542
          %v661 = vunpack.c.l.b16 %v543
          %v662 = vunpack.c.h.b16 %v543
          %v663 = vunpack.c.l.b16 %v544
          %v664 = vunpack.c.h.b16 %v544
          %v665 = vunpack.c.l.b16 %v545
          %v666 = vunpack.c.h.b16 %v545
          %v667 = vunpack.c.l.b16 %v546
          %v668 = vunpack.c.h.b16 %v546
          %v669 = vunpack.c.l.b16 %v547
          %v670 = vunpack.c.h.b16 %v547
          %v671 = vunpack.c.l.b16 %v548
          %v672 = vunpack.c.h.b16 %v548
          %v673 = vunpack.c.l.b16 %v549
          %v674 = vunpack.c.h.b16 %v549
          %v675 = vunpack.c.l.b16 %v550
          %v676 = vunpack.c.h.b16 %v550
          %v677 = vunpack.c.l.b16 %v551
          %v678 = vunpack.c.h.b16 %v551
          %v679 = vunpack.c.l.b16 %v552
          %v680 = vunpack.c.h.b16 %v552
          %v681 = vunpack.c.l.b16 %v553
          %v682 = vunpack.c.h.b16 %v553
          %v683 = vunpack.c.l.b16 %v554
          %v684 = vunpack.c.h.b16 %v554
          %v685 = vunpack.c.l.b16 %v555
          %v686 = vunpack.c.h.b16 %v555
          %v687 = vunpack.c.l.b16 %v556
          %v688 = vunpack.c.h.b16 %v556
          %v689 = vunpack.c.l.b16 %v557
          %v690 = vunpack.c.h.b16 %v557
          %v691 = vunpack.c.l.b16 %v558
          %v692 = vunpack.c.h.b16 %v558
          %v693 = vunpack.c.l.b16 %v559
          %v694 = vunpack.c.h.b16 %v559
          %v695 = vunpack.c.l.b16 %v560
          %v696 = vunpack.c.h.b16 %v560
          %v697 = vunpack.c.l.b16 %v561
          %v698 = vunpack.c.h.b16 %v561
          %v699 = vunpack.c.l.b16 %v562
          %v700 = vunpack.c.h.b16 %v562
          %v701 = vunpack.c.l.b16 %v563
          %v702 = vunpack.c.h.b16 %v563
          %v703 = vunpack.c.l.b16 %v564
          %v704 = vunpack.c.h.b16 %v564
          %v705 = vunpack.c.l.b16 %v565
          %v706 = vunpack.c.h.b16 %v565
          %v707 = vunpack.c.l.b16 %v566
          %v708 = vunpack.c.h.b16 %v566
          %v709 = vunpack.c.l.b16 %v567
          %v710 = vunpack.c.h.b16 %v567
          %v711 = vunpack.c.l.b16 %v568
          %v712 = vunpack.c.h.b16 %v568
          %v713 = vunpack.c.l.b16 %v569
          %v714 = vunpack.c.h.b16 %v569
          %v715 = vunpack.c.l.b16 %v570
          %v716 = vunpack.c.h.b16 %v570
          %v717 = vunpack.c.l.b16 %v571
          %v718 = vunpack.c.h.b16 %v571
          %v719 = vunpack.c.l.b16 %v572
          %v720 = vunpack.c.h.b16 %v572
          %v721 = vpack.c.b16 %v645, %v641
          %v722 = vpack.c.b16 %v646, %v642
          %v723 = vpack.c.b16 %v647, %v643
          %v724 = vpack.c.b16 %v648, %v644
          %v725 = vpack.c.b16 %v653, %v649
          %v726 = vpack.c.b16 %v654, %v650
          %v727 = vpack.c.b16 %v655, %v651
          %v728 = vpack.c.b16 %v656, %v652
          %v729 = vpack.c.b16 %v661, %v657
          %v730 = vpack.c.b16 %v662, %v658
          %v731 = vpack.c.b16 %v663, %v659
          %v732 = vpack.c.b16 %v664, %v660
          %v733 = vpack.c.b16 %v669, %v665
          %v734 = vpack.c.b16 %v670, %v666
          %v735 = vpack.c.b16 %v671, %v667
          %v736 = vpack.c.b16 %v672, %v668
          %v737 = vpack.c.b16 %v677, %v673
          %v738 = vpack.c.b16 %v678, %v674
          %v739 = vpack.c.b16 %v679, %v675
          %v740 = vpack.c.b16 %v680, %v676
          %v741 = vpack.c.b16 %v685, %v681
          %v742 = vpack.c.b16 %v686, %v682
          %v743 = vpack.c.b16 %v687, %v683
          %v744 = vpack.c.b16 %v688, %v684
          %v745 = vpack.c.b16 %v693, %v689
          %v746 = vpack.c.b16 %v694, %v690
          %v747 = vpack.c.b16 %v695, %v691
          %v748 = vpack.c.b16 %v696, %v692
          %v749 = vpack.c.b16 %v701, %v697
          %v750 = vpack.c.b16 %v702, %v698
          %v751 = vpack.c.b16 %v703, %v699
          %v752 = vpack.c.b16 %v704, %v700
          %v753 = vpack.c.b16 %v709, %v705
          %v754 = vpack.c.b16 %v710, %v706
          %v755 = vpack.c.b16 %v711, %v707
          %v756 = vpack.c.b16 %v712, %v708
          %v757 = vpack.c.b16 %v717, %v713
          %v758 = vpack.c.b16 %v718, %v714
          %v759 = vpack.c.b16 %v719, %v715
          %v760 = vpack.c.b16 %v720, %v716
          %vm801 = vcmask 261120
          %v803 = vsel %vm801, %v599, 0
          %805 = vmatprep.subr.bf16.mxu0 %v722
          %806 = vmatpush1.bf16.msra.mxu0 %v721
          %807 = vmatprep.subr.bf16.mxu0 %v726
          %808 = vmatpush1.bf16.msra.mxu0 %v725
          %809 = vmatprep.subr.bf16.mxu0 %v730
          %810 = vmatpush1.bf16.msra.mxu0 %v729
          %811 = vmatprep.subr.bf16.mxu0 %v734
          %812 = vmatpush1.bf16.msra.mxu0 %v733
          %813 = vmatprep.subr.bf16.mxu0 %v738
          %814 = vmatpush1.bf16.msra.mxu0 %v737
          %815 = vmatprep.subr.bf16.mxu0 %v742
          %816 = vmatpush1.bf16.msra.mxu0 %v741
          %817 = vmatprep.subr.bf16.mxu0 %v746
          %818 = vmatpush1.bf16.msra.mxu0 %v745
          %819 = vmatprep.subr.bf16.mxu0 %v750
          %820 = vmatpush1.bf16.msra.mxu0 %v749
          %821 = vmatprep.subr.bf16.mxu0 %v754
          %822 = vmatpush1.bf16.msra.mxu0 %v753
          %823 = vmatprep.subr.bf16.mxu0 %v758
          %824 = vmatpush1.bf16.msra.mxu0 %v757
          %825 = vmatprep.subr.bf16.mxu0 0
          %826 = vmatpush1.bf16.msra.mxu0 0
          %827 = vmatprep.subr.bf16.mxu0 0
          %828 = vmatpush1.bf16.msra.mxu0 0
          %829 = vmatprep.subr.bf16.mxu0 0
          %830 = vmatpush1.bf16.msra.mxu0 0
          %831 = vmatprep.subr.bf16.mxu0 0
          %832 = vmatpush1.bf16.msra.mxu0 0
          %833 = vmatprep.subr.bf16.mxu0 0
          %834 = vmatpush1.bf16.msra.mxu0 0
          %835 = vmatprep.subr.bf16.mxu0 0
          %836 = vmatpush1.bf16.msra.mxu0 0
          %837 = vmatprep.mubr.bf16.mxu0 %v803
          %838 = vmatmul.mubr.bf16.gmra.mrb[0].mxu0 %v598
          %v839 = vpop.f32.mrb[0].mxu0
          %v840 = vadd.f32 %v578, %v839
          %v841 = vpop.f32.mrb[0].mxu0
          %v842 = vadd.f32 %v582, %v841
          %v843 = vpop.f32.mrb[0].mxu0
          %v844 = vpop.f32.mrb[0].mxu0
          %845 = vdwg.mxu0
          %846 = vmatprep.subr.bf16.mxu0 %v724
          %847 = vmatpush1.bf16.msra.mxu0 %v723
          %848 = vmatprep.subr.bf16.mxu0 %v728
          %849 = vmatpush1.bf16.msra.mxu0 %v727
          %850 = vmatprep.subr.bf16.mxu0 %v732
          %851 = vmatpush1.bf16.msra.mxu0 %v731
          %852 = vmatprep.subr.bf16.mxu0 %v736
          %853 = vmatpush1.bf16.msra.mxu0 %v735
          %854 = vmatprep.subr.bf16.mxu0 %v740
          %855 = vmatpush1.bf16.msra.mxu0 %v739
          %856 = vmatprep.subr.bf16.mxu0 %v744
          %857 = vmatpush1.bf16.msra.mxu0 %v743
          %858 = vmatprep.subr.bf16.mxu0 %v748
          %859 = vmatpush1.bf16.msra.mxu0 %v747
          %860 = vmatprep.subr.bf16.mxu0 %v752
          %861 = vmatpush1.bf16.msra.mxu0 %v751
          %862 = vmatprep.subr.bf16.mxu0 %v756
          %863 = vmatpush1.bf16.msra.mxu0 %v755
          %864 = vmatprep.subr.bf16.mxu0 %v760
          %865 = vmatpush1.bf16.msra.mxu0 %v759
          %866 = vmatprep.subr.bf16.mxu0 0
          %867 = vmatpush1.bf16.msra.mxu0 0
          %868 = vmatprep.subr.bf16.mxu0 0
          %869 = vmatpush1.bf16.msra.mxu0 0
          %870 = vmatprep.subr.bf16.mxu0 0
          %871 = vmatpush1.bf16.msra.mxu0 0
          %872 = vmatprep.subr.bf16.mxu0 0
          %873 = vmatpush1.bf16.msra.mxu0 0
          %874 = vmatprep.subr.bf16.mxu0 0
          %875 = vmatpush1.bf16.msra.mxu0 0
          %876 = vmatprep.subr.bf16.mxu0 0
          %877 = vmatpush1.bf16.msra.mxu0 0
          %878 = vmatprep.mubr.bf16.mxu0 %v803
          %879 = vmatmul.mubr.bf16.gmra.mrb[0].mxu0 %v598
          %v880 = vpop.f32.mrb[0].mxu0
          %v881 = vadd.f32 %v586, %v880
          %v882 = vpop.f32.mrb[0].mxu0
          %v883 = vadd.f32 %v590, %v882
          %v884 = vpop.f32.mrb[0].mxu0
          %v885 = vpop.f32.mrb[0].mxu0
          %886 = vdwg.mxu0
          %v887 = vld [vmem:[#allocation8] sm:$0xff]
          %v888 = vxor.u32 %v840, 2147483648
          %v889 = vmul.f32 %v888, 1.442695
          %v890 = vpow.pop %v889
          %v891 = vadd.f32 %v890, 1.0
          %v892 = vrcp.pop %v891
          %v893 = vmul.f32 1.0, %v892
          %v894 = vxor.u32 %v842, 2147483648
          %v895 = vmul.f32 %v894, 1.442695
          %v896 = vpow.pop %v895
          %v897 = vadd.f32 %v896, 1.0
          %v898 = vrcp.pop %v897
          %v899 = vmul.f32 1.0, %v898
          %v900 = vtanh.pop %v881
          %v901 = vxor.u32 %v883, 2147483648
          %v902 = vmul.f32 %v901, 1.442695
          %v903 = vpow.pop %v902
          %v904 = vadd.f32 %v903, 1.0
          %v905 = vrcp.pop %v904
          %v906 = vmul.f32 1.0, %v905
          %v907 = vmul.f32 %v899, %v887
          %v908 = vmul.f32 %v893, %v900
          %v909 = vadd.f32 %v907, %v908
          %v910 = vtanh.pop %v909
          %v911 = vmul.f32 %v906, %v910
          %s912 = scalar_lea.vmem [#allocation6], 8
          %v913 = vld [vmem:[%s912] sm:$0xff]
          %v914 = vpack.c.bf16 %v911, %v911
          %v915 = vpack.c.bf16 %v913, %v913
          %v916 = vld [vmem:[#allocation12] sm:$0xff]
          %v917 = vld [vmem:[#allocation12 + $0x8] sm:$0xff]
          %v918 = vld [vmem:[#allocation12 + $0x10] sm:$0xff]
          %v919 = vld [vmem:[#allocation12 + $0x18] sm:$0xff]
          %v920 = vld [vmem:[#allocation12 + $0x20] sm:$0xff]
          %v921 = vld [vmem:[#allocation12 + $0x28] sm:$0xff]
          %v922 = vld [vmem:[#allocation12 + $0x30] sm:$0xff]
          %v923 = vld [vmem:[#allocation12 + $0x38] sm:$0xff]
          %v924 = vld [vmem:[#allocation12 + $0x40] sm:$0xff]
          %v925 = vld [vmem:[#allocation12 + $0x48] sm:$0xff]
          %v926 = vld [vmem:[#allocation12 + $0x50] sm:$0xff]
          %v927 = vld [vmem:[#allocation12 + $0x58] sm:$0xff]
          %v928 = vld [vmem:[#allocation12 + $0x60] sm:$0xff]
          %v929 = vld [vmem:[#allocation12 + $0x68] sm:$0xff]
          %v930 = vld [vmem:[#allocation12 + $0x70] sm:$0xff]
          %v931 = vld [vmem:[#allocation12 + $0x78] sm:$0xff]
          %v932 = vld [vmem:[#allocation12 + $0x80] sm:$0xff]
          %v933 = vld [vmem:[#allocation12 + $0x88] sm:$0xff]
          %v934 = vld [vmem:[#allocation12 + $0x90] sm:$0xff]
          %v935 = vld [vmem:[#allocation12 + $0x98] sm:$0xff]
          %v936 = vld [vmem:[#allocation12 + $0xa0] sm:$0xff]
          %v937 = vld [vmem:[#allocation12 + $0xa8] sm:$0xff]
          %v938 = vld [vmem:[#allocation12 + $0xb0] sm:$0xff]
          %v939 = vld [vmem:[#allocation12 + $0xb8] sm:$0xff]
          %v940 = vld [vmem:[#allocation12 + $0xc0] sm:$0xff]
          %v941 = vld [vmem:[#allocation12 + $0xc8] sm:$0xff]
          %v942 = vld [vmem:[#allocation12 + $0xd0] sm:$0xff]
          %v943 = vld [vmem:[#allocation12 + $0xd8] sm:$0xff]
          %v944 = vld [vmem:[#allocation12 + $0xe0] sm:$0xff]
          %v945 = vld [vmem:[#allocation12 + $0xe8] sm:$0xff]
          %v946 = vld [vmem:[#allocation12 + $0xf0] sm:$0xff]
          %v947 = vld [vmem:[#allocation12 + $0xf8] sm:$0xff]
          %v948 = vld [vmem:[#allocation12 + $0x100] sm:$0xff]
          %v949 = vld [vmem:[#allocation12 + $0x108] sm:$0xff]
          %v950 = vld [vmem:[#allocation12 + $0x110] sm:$0xff]
          %v951 = vld [vmem:[#allocation12 + $0x118] sm:$0xff]
          %v952 = vld [vmem:[#allocation12 + $0x120] sm:$0xff]
          %v953 = vld [vmem:[#allocation12 + $0x128] sm:$0xff]
          %v954 = vld [vmem:[#allocation12 + $0x130] sm:$0xff]
          %v955 = vld [vmem:[#allocation12 + $0x138] sm:$0xff]
          %v956 = vld [vmem:[#allocation12 + $0x140] sm:$0xff]
          %v957 = vld [vmem:[#allocation12 + $0x148] sm:$0xff]
          %v958 = vld [vmem:[#allocation12 + $0x150] sm:$0xff]
          %v959 = vld [vmem:[#allocation12 + $0x158] sm:$0xff]
          %v960 = vld [vmem:[#allocation12 + $0x160] sm:$0xff]
          %v961 = vld [vmem:[#allocation12 + $0x168] sm:$0xff]
          %v962 = vld [vmem:[#allocation12 + $0x170] sm:$0xff]
          %v963 = vld [vmem:[#allocation12 + $0x178] sm:$0xff]
          %v964 = vld [vmem:[#allocation12 + $0x180] sm:$0xff]
          %v965 = vld [vmem:[#allocation12 + $0x188] sm:$0xff]
          %v966 = vld [vmem:[#allocation12 + $0x190] sm:$0xff]
          %v967 = vld [vmem:[#allocation12 + $0x198] sm:$0xff]
          %v968 = vld [vmem:[#allocation12 + $0x1a0] sm:$0xff]
          %v969 = vld [vmem:[#allocation12 + $0x1a8] sm:$0xff]
          %v970 = vld [vmem:[#allocation12 + $0x1b0] sm:$0xff]
          %v971 = vld [vmem:[#allocation12 + $0x1b8] sm:$0xff]
          %v972 = vld [vmem:[#allocation12 + $0x1c0] sm:$0xff]
          %v973 = vld [vmem:[#allocation12 + $0x1c8] sm:$0xff]
          %v974 = vld [vmem:[#allocation12 + $0x1d0] sm:$0xff]
          %v975 = vld [vmem:[#allocation12 + $0x1d8] sm:$0xff]
          %v976 = vld [vmem:[#allocation12 + $0x1e0] sm:$0xff]
          %v977 = vld [vmem:[#allocation12 + $0x1e8] sm:$0xff]
          %v978 = vld [vmem:[#allocation12 + $0x1f0] sm:$0xff]
          %v979 = vld [vmem:[#allocation12 + $0x1f8] sm:$0xff]
          %v980 = vld [vmem:[#allocation14] sm:$0xf]
          %v982 = vlaneseq
          %v983 = vshrl.u32 %v982, 7
          %v984 = vsub.s32 0, %v983
          %v985 = vrot.slane %v980, %v984
          %v986 = vlaneseq
          %v987 = vshrl.u32 %v986, 7
          %v988 = vsub.s32 1, %v987
          %v989 = vrot.slane %v980, %v988
          %v990 = vlaneseq
          %v991 = vshrl.u32 %v990, 7
          %v992 = vsub.s32 2, %v991
          %v993 = vrot.slane %v980, %v992
          %v994 = vlaneseq
          %v995 = vshrl.u32 %v994, 7
          %v996 = vsub.s32 3, %v995
          %v997 = vrot.slane %v980, %v996
          %v1066 = vunpack.c.l.b16 %v916
          %v1067 = vunpack.c.h.b16 %v916
          %v1068 = vunpack.c.l.b16 %v917
          %v1069 = vunpack.c.h.b16 %v917
          %v1070 = vunpack.c.l.b16 %v918
          %v1071 = vunpack.c.h.b16 %v918
          %v1072 = vunpack.c.l.b16 %v919
          %v1073 = vunpack.c.h.b16 %v919
          %v1074 = vunpack.c.l.b16 %v920
          %v1075 = vunpack.c.h.b16 %v920
          %v1076 = vunpack.c.l.b16 %v921
          %v1077 = vunpack.c.h.b16 %v921
          %v1078 = vunpack.c.l.b16 %v922
          %v1079 = vunpack.c.h.b16 %v922
          %v1080 = vunpack.c.l.b16 %v923
          %v1081 = vunpack.c.h.b16 %v923
          %v1082 = vunpack.c.l.b16 %v924
          %v1083 = vunpack.c.h.b16 %v924
          %v1084 = vunpack.c.l.b16 %v925
          %v1085 = vunpack.c.h.b16 %v925
          %v1086 = vunpack.c.l.b16 %v926
          %v1087 = vunpack.c.h.b16 %v926
          %v1088 = vunpack.c.l.b16 %v927
          %v1089 = vunpack.c.h.b16 %v927
          %v1090 = vunpack.c.l.b16 %v928
          %v1091 = vunpack.c.h.b16 %v928
          %v1092 = vunpack.c.l.b16 %v929
          %v1093 = vunpack.c.h.b16 %v929
          %v1094 = vunpack.c.l.b16 %v930
          %v1095 = vunpack.c.h.b16 %v930
          %v1096 = vunpack.c.l.b16 %v931
          %v1097 = vunpack.c.h.b16 %v931
          %v1098 = vunpack.c.l.b16 %v932
          %v1099 = vunpack.c.h.b16 %v932
          %v1100 = vunpack.c.l.b16 %v933
          %v1101 = vunpack.c.h.b16 %v933
          %v1102 = vunpack.c.l.b16 %v934
          %v1103 = vunpack.c.h.b16 %v934
          %v1104 = vunpack.c.l.b16 %v935
          %v1105 = vunpack.c.h.b16 %v935
          %v1106 = vunpack.c.l.b16 %v936
          %v1107 = vunpack.c.h.b16 %v936
          %v1108 = vunpack.c.l.b16 %v937
          %v1109 = vunpack.c.h.b16 %v937
          %v1110 = vunpack.c.l.b16 %v938
          %v1111 = vunpack.c.h.b16 %v938
          %v1112 = vunpack.c.l.b16 %v939
          %v1113 = vunpack.c.h.b16 %v939
          %v1114 = vunpack.c.l.b16 %v940
          %v1115 = vunpack.c.h.b16 %v940
          %v1116 = vunpack.c.l.b16 %v941
          %v1117 = vunpack.c.h.b16 %v941
          %v1118 = vunpack.c.l.b16 %v942
          %v1119 = vunpack.c.h.b16 %v942
          %v1120 = vunpack.c.l.b16 %v943
          %v1121 = vunpack.c.h.b16 %v943
          %v1122 = vunpack.c.l.b16 %v944
          %v1123 = vunpack.c.h.b16 %v944
          %v1124 = vunpack.c.l.b16 %v945
          %v1125 = vunpack.c.h.b16 %v945
          %v1126 = vunpack.c.l.b16 %v946
          %v1127 = vunpack.c.h.b16 %v946
          %v1128 = vunpack.c.l.b16 %v947
          %v1129 = vunpack.c.h.b16 %v947
          %v1130 = vunpack.c.l.b16 %v948
          %v1131 = vunpack.c.h.b16 %v948
          %v1132 = vunpack.c.l.b16 %v949
          %v1133 = vunpack.c.h.b16 %v949
          %v1134 = vunpack.c.l.b16 %v950
          %v1135 = vunpack.c.h.b16 %v950
          %v1136 = vunpack.c.l.b16 %v951
          %v1137 = vunpack.c.h.b16 %v951
          %v1138 = vunpack.c.l.b16 %v952
          %v1139 = vunpack.c.h.b16 %v952
          %v1140 = vunpack.c.l.b16 %v953
          %v1141 = vunpack.c.h.b16 %v953
          %v1142 = vunpack.c.l.b16 %v954
          %v1143 = vunpack.c.h.b16 %v954
          %v1144 = vunpack.c.l.b16 %v955
          %v1145 = vunpack.c.h.b16 %v955
          %v1146 = vunpack.c.l.b16 %v956
          %v1147 = vunpack.c.h.b16 %v956
          %v1148 = vunpack.c.l.b16 %v957
          %v1149 = vunpack.c.h.b16 %v957
          %v1150 = vunpack.c.l.b16 %v958
          %v1151 = vunpack.c.h.b16 %v958
          %v1152 = vunpack.c.l.b16 %v959
          %v1153 = vunpack.c.h.b16 %v959
          %v1154 = vunpack.c.l.b16 %v960
          %v1155 = vunpack.c.h.b16 %v960
          %v1156 = vunpack.c.l.b16 %v961
          %v1157 = vunpack.c.h.b16 %v961
          %v1158 = vunpack.c.l.b16 %v962
          %v1159 = vunpack.c.h.b16 %v962
          %v1160 = vunpack.c.l.b16 %v963
          %v1161 = vunpack.c.h.b16 %v963
          %v1162 = vunpack.c.l.b16 %v964
          %v1163 = vunpack.c.h.b16 %v964
          %v1164 = vunpack.c.l.b16 %v965
          %v1165 = vunpack.c.h.b16 %v965
          %v1166 = vunpack.c.l.b16 %v966
          %v1167 = vunpack.c.h.b16 %v966
          %v1168 = vunpack.c.l.b16 %v967
          %v1169 = vunpack.c.h.b16 %v967
          %v1170 = vunpack.c.l.b16 %v968
          %v1171 = vunpack.c.h.b16 %v968
          %v1172 = vunpack.c.l.b16 %v969
          %v1173 = vunpack.c.h.b16 %v969
          %v1174 = vunpack.c.l.b16 %v970
          %v1175 = vunpack.c.h.b16 %v970
          %v1176 = vunpack.c.l.b16 %v971
          %v1177 = vunpack.c.h.b16 %v971
          %v1178 = vunpack.c.l.b16 %v972
          %v1179 = vunpack.c.h.b16 %v972
          %v1180 = vunpack.c.l.b16 %v973
          %v1181 = vunpack.c.h.b16 %v973
          %v1182 = vunpack.c.l.b16 %v974
          %v1183 = vunpack.c.h.b16 %v974
          %v1184 = vunpack.c.l.b16 %v975
          %v1185 = vunpack.c.h.b16 %v975
          %v1186 = vunpack.c.l.b16 %v976
          %v1187 = vunpack.c.h.b16 %v976
          %v1188 = vunpack.c.l.b16 %v977
          %v1189 = vunpack.c.h.b16 %v977
          %v1190 = vunpack.c.l.b16 %v978
          %v1191 = vunpack.c.h.b16 %v978
          %v1192 = vunpack.c.l.b16 %v979
          %v1193 = vunpack.c.h.b16 %v979
          %v1194 = vpack.c.b16 %v1070, %v1066
          %v1195 = vpack.c.b16 %v1071, %v1067
          %v1196 = vpack.c.b16 %v1072, %v1068
          %v1197 = vpack.c.b16 %v1073, %v1069
          %v1198 = vpack.c.b16 %v1078, %v1074
          %v1199 = vpack.c.b16 %v1079, %v1075
          %v1200 = vpack.c.b16 %v1080, %v1076
          %v1201 = vpack.c.b16 %v1081, %v1077
          %v1202 = vpack.c.b16 %v1086, %v1082
          %v1203 = vpack.c.b16 %v1087, %v1083
          %v1204 = vpack.c.b16 %v1088, %v1084
          %v1205 = vpack.c.b16 %v1089, %v1085
          %v1206 = vpack.c.b16 %v1094, %v1090
          %v1207 = vpack.c.b16 %v1095, %v1091
          %v1208 = vpack.c.b16 %v1096, %v1092
          %v1209 = vpack.c.b16 %v1097, %v1093
          %v1210 = vpack.c.b16 %v1102, %v1098
          %v1211 = vpack.c.b16 %v1103, %v1099
          %v1212 = vpack.c.b16 %v1104, %v1100
          %v1213 = vpack.c.b16 %v1105, %v1101
          %v1214 = vpack.c.b16 %v1110, %v1106
          %v1215 = vpack.c.b16 %v1111, %v1107
          %v1216 = vpack.c.b16 %v1112, %v1108
          %v1217 = vpack.c.b16 %v1113, %v1109
          %v1218 = vpack.c.b16 %v1118, %v1114
          %v1219 = vpack.c.b16 %v1119, %v1115
          %v1220 = vpack.c.b16 %v1120, %v1116
          %v1221 = vpack.c.b16 %v1121, %v1117
          %v1222 = vpack.c.b16 %v1126, %v1122
          %v1223 = vpack.c.b16 %v1127, %v1123
          %v1224 = vpack.c.b16 %v1128, %v1124
          %v1225 = vpack.c.b16 %v1129, %v1125
          %v1226 = vpack.c.b16 %v1134, %v1130
          %v1227 = vpack.c.b16 %v1135, %v1131
          %v1228 = vpack.c.b16 %v1136, %v1132
          %v1229 = vpack.c.b16 %v1137, %v1133
          %v1230 = vpack.c.b16 %v1142, %v1138
          %v1231 = vpack.c.b16 %v1143, %v1139
          %v1232 = vpack.c.b16 %v1144, %v1140
          %v1233 = vpack.c.b16 %v1145, %v1141
          %v1234 = vpack.c.b16 %v1150, %v1146
          %v1235 = vpack.c.b16 %v1151, %v1147
          %v1236 = vpack.c.b16 %v1152, %v1148
          %v1237 = vpack.c.b16 %v1153, %v1149
          %v1238 = vpack.c.b16 %v1158, %v1154
          %v1239 = vpack.c.b16 %v1159, %v1155
          %v1240 = vpack.c.b16 %v1160, %v1156
          %v1241 = vpack.c.b16 %v1161, %v1157
          %v1242 = vpack.c.b16 %v1166, %v1162
          %v1243 = vpack.c.b16 %v1167, %v1163
          %v1244 = vpack.c.b16 %v1168, %v1164
          %v1245 = vpack.c.b16 %v1169, %v1165
          %v1246 = vpack.c.b16 %v1174, %v1170
          %v1247 = vpack.c.b16 %v1175, %v1171
          %v1248 = vpack.c.b16 %v1176, %v1172
          %v1249 = vpack.c.b16 %v1177, %v1173
          %v1250 = vpack.c.b16 %v1182, %v1178
          %v1251 = vpack.c.b16 %v1183, %v1179
          %v1252 = vpack.c.b16 %v1184, %v1180
          %v1253 = vpack.c.b16 %v1185, %v1181
          %v1254 = vpack.c.b16 %v1190, %v1186
          %v1255 = vpack.c.b16 %v1191, %v1187
          %v1256 = vpack.c.b16 %v1192, %v1188
          %v1257 = vpack.c.b16 %v1193, %v1189
          %1322 = vmatprep.subr.bf16.mxu0 %v1195
          %1323 = vmatpush1.bf16.msra.mxu0 %v1194
          %1324 = vmatprep.subr.bf16.mxu0 %v1199
          %1325 = vmatpush1.bf16.msra.mxu0 %v1198
          %1326 = vmatprep.subr.bf16.mxu0 %v1203
          %1327 = vmatpush1.bf16.msra.mxu0 %v1202
          %1328 = vmatprep.subr.bf16.mxu0 %v1207
          %1329 = vmatpush1.bf16.msra.mxu0 %v1206
          %1330 = vmatprep.subr.bf16.mxu0 %v1211
          %1331 = vmatpush1.bf16.msra.mxu0 %v1210
          %1332 = vmatprep.subr.bf16.mxu0 %v1215
          %1333 = vmatpush1.bf16.msra.mxu0 %v1214
          %1334 = vmatprep.subr.bf16.mxu0 %v1219
          %1335 = vmatpush1.bf16.msra.mxu0 %v1218
          %1336 = vmatprep.subr.bf16.mxu0 %v1223
          %1337 = vmatpush1.bf16.msra.mxu0 %v1222
          %1338 = vmatprep.subr.bf16.mxu0 %v1227
          %1339 = vmatpush1.bf16.msra.mxu0 %v1226
          %1340 = vmatprep.subr.bf16.mxu0 %v1231
          %1341 = vmatpush1.bf16.msra.mxu0 %v1230
          %1342 = vmatprep.subr.bf16.mxu0 %v1235
          %1343 = vmatpush1.bf16.msra.mxu0 %v1234
          %1344 = vmatprep.subr.bf16.mxu0 %v1239
          %1345 = vmatpush1.bf16.msra.mxu0 %v1238
          %1346 = vmatprep.subr.bf16.mxu0 %v1243
          %1347 = vmatpush1.bf16.msra.mxu0 %v1242
          %1348 = vmatprep.subr.bf16.mxu0 %v1247
          %1349 = vmatpush1.bf16.msra.mxu0 %v1246
          %1350 = vmatprep.subr.bf16.mxu0 %v1251
          %1351 = vmatpush1.bf16.msra.mxu0 %v1250
          %1352 = vmatprep.subr.bf16.mxu0 %v1255
          %1353 = vmatpush1.bf16.msra.mxu0 %v1254
          %1354 = vmatprep.mubr.bf16.mxu0 %v915
          %1355 = vmatmul.mubr.bf16.gmra.mrb[0].mxu0 %v914
          %v1356 = vpop.f32.mrb[0].mxu0
          %v1357 = vadd.f32 %v985, %v1356
          %v1358 = vpop.f32.mrb[0].mxu0
          %v1359 = vadd.f32 %v989, %v1358
          %v1360 = vpop.f32.mrb[0].mxu0
          %v1361 = vpop.f32.mrb[0].mxu0
          %1362 = vdwg.mxu0
          %1363 = vmatprep.subr.bf16.mxu0 %v1197
          %1364 = vmatpush1.bf16.msra.mxu0 %v1196
          %1365 = vmatprep.subr.bf16.mxu0 %v1201
          %1366 = vmatpush1.bf16.msra.mxu0 %v1200
          %1367 = vmatprep.subr.bf16.mxu0 %v1205
          %1368 = vmatpush1.bf16.msra.mxu0 %v1204
          %1369 = vmatprep.subr.bf16.mxu0 %v1209
          %1370 = vmatpush1.bf16.msra.mxu0 %v1208
          %1371 = vmatprep.subr.bf16.mxu0 %v1213
          %1372 = vmatpush1.bf16.msra.mxu0 %v1212
          %1373 = vmatprep.subr.bf16.mxu0 %v1217
          %1374 = vmatpush1.bf16.msra.mxu0 %v1216
          %1375 = vmatprep.subr.bf16.mxu0 %v1221
          %1376 = vmatpush1.bf16.msra.mxu0 %v1220
          %1377 = vmatprep.subr.bf16.mxu0 %v1225
          %1378 = vmatpush1.bf16.msra.mxu0 %v1224
          %1379 = vmatprep.subr.bf16.mxu0 %v1229
          %1380 = vmatpush1.bf16.msra.mxu0 %v1228
          %1381 = vmatprep.subr.bf16.mxu0 %v1233
          %1382 = vmatpush1.bf16.msra.mxu0 %v1232
          %1383 = vmatprep.subr.bf16.mxu0 %v1237
          %1384 = vmatpush1.bf16.msra.mxu0 %v1236
          %1385 = vmatprep.subr.bf16.mxu0 %v1241
          %1386 = vmatpush1.bf16.msra.mxu0 %v1240
          %1387 = vmatprep.subr.bf16.mxu0 %v1245
          %1388 = vmatpush1.bf16.msra.mxu0 %v1244
          %1389 = vmatprep.subr.bf16.mxu0 %v1249
          %1390 = vmatpush1.bf16.msra.mxu0 %v1248
          %1391 = vmatprep.subr.bf16.mxu0 %v1253
          %1392 = vmatpush1.bf16.msra.mxu0 %v1252
          %1393 = vmatprep.subr.bf16.mxu0 %v1257
          %1394 = vmatpush1.bf16.msra.mxu0 %v1256
          %1395 = vmatprep.mubr.bf16.mxu0 %v915
          %1396 = vmatmul.mubr.bf16.gmra.mrb[0].mxu0 %v914
          %v1397 = vpop.f32.mrb[0].mxu0
          %v1398 = vadd.f32 %v993, %v1397
          %v1399 = vpop.f32.mrb[0].mxu0
          %v1400 = vadd.f32 %v997, %v1399
          %v1401 = vpop.f32.mrb[0].mxu0
          %v1402 = vpop.f32.mrb[0].mxu0
          %1403 = vdwg.mxu0
          %s1404 = scalar_lea.vmem [#allocation8], 8
          %v1405 = vld [vmem:[%s1404] sm:$0xff]
          %v1406 = vxor.u32 %v1357, 2147483648
          %v1407 = vmul.f32 %v1406, 1.442695
          %v1408 = vpow.pop %v1407
          %v1409 = vadd.f32 %v1408, 1.0
          %v1410 = vrcp.pop %v1409
          %v1411 = vmul.f32 1.0, %v1410
          %v1412 = vxor.u32 %v1359, 2147483648
          %v1413 = vmul.f32 %v1412, 1.442695
          %v1414 = vpow.pop %v1413
          %v1415 = vadd.f32 %v1414, 1.0
          %v1416 = vrcp.pop %v1415
          %v1417 = vmul.f32 1.0, %v1416
          %v1418 = vtanh.pop %v1398
          %v1419 = vxor.u32 %v1400, 2147483648
          %v1420 = vmul.f32 %v1419, 1.442695
          %v1421 = vpow.pop %v1420
          %v1422 = vadd.f32 %v1421, 1.0
          %v1423 = vrcp.pop %v1422
          %v1424 = vmul.f32 1.0, %v1423
          %v1425 = vmul.f32 %v1417, %v1405
          %v1426 = vmul.f32 %v1411, %v1418
          %v1427 = vadd.f32 %v1425, %v1426
          %v1428 = vtanh.pop %v1427
          %v1429 = vmul.f32 %v1424, %v1428
          %v1430 = vpack.c.bf16 %v1429, %v1429
          %1431 = vst [vmem:[#allocation2] sm:$0xf] %v1430
          %1432 = vst [vmem:[#allocation19] sm:$0xff] %v911
          %s1433 = scalar_lea.vmem [#allocation19], 8
          %1434 = vst [vmem:[%s1433] sm:$0xff] %v1429
          %1435 = vst [vmem:[#allocation21] sm:$0xff] %v909
          %s1436 = scalar_lea.vmem [#allocation21], 8
          %1437 = vst [vmem:[%s1436] sm:$0xff] %v1427
        $region96: #{decoder_forward.1} parent=55 // pred_fallthru
          _
        %v1438 = vld [vmem:[#allocation2] sm:$0xf]
        %v1439 = vld [vmem:[%s476] sm:$0xf]
        %v1440 = vld [vmem:[%s476 + $0x4] sm:$0xf]
        %v1441 = vld [vmem:[%s476 + $0x8] sm:$0xf]
        %v1442 = vld [vmem:[%s476 + $0xc] sm:$0xf]
        %v1443 = vld [vmem:[%s476 + $0x10] sm:$0xf]
        %v1444 = vld [vmem:[%s476 + $0x14] sm:$0xf]
        %v1445 = vld [vmem:[%s476 + $0x18] sm:$0xf]
        %v1446 = vld [vmem:[%s476 + $0x1c] sm:$0xf]
        %v1447 = vld [vmem:[%s476 + $0x20] sm:$0xf]
        %v1448 = vld [vmem:[%s476 + $0x24] sm:$0xf]
        %v1449 = vld [vmem:[%s476 + $0x28] sm:$0xf]
        %v1450 = vld [vmem:[%s476 + $0x2c] sm:$0xf]
        %v1451 = vld [vmem:[%s476 + $0x30] sm:$0xf]
        %v1452 = vld [vmem:[%s476 + $0x34] sm:$0xf]
        %v1453 = vld [vmem:[%s476 + $0x38] sm:$0xf]
        %v1454 = vld [vmem:[%s476 + $0x3c] sm:$0xf]
        %v1455 = vld [vmem:[%s484] sm:$0x1]
        %v1457 = vlaneseq
        %v1458 = vshrl.u32 %v1457, 7
        %v1459 = vsub.s32 0, %v1458
        %v1460 = vrot.slane %v1455, %v1459
        %v1478 = vunpack.c.l.b16 %v1439
        %v1479 = vunpack.c.l.b16 %v1440
        %v1480 = vunpack.c.l.b16 %v1441
        %v1481 = vunpack.c.l.b16 %v1442
        %v1482 = vunpack.c.l.b16 %v1443
        %v1483 = vunpack.c.l.b16 %v1444
        %v1484 = vunpack.c.l.b16 %v1445
        %v1485 = vunpack.c.l.b16 %v1446
        %v1486 = vunpack.c.l.b16 %v1447
        %v1487 = vunpack.c.l.b16 %v1448
        %v1488 = vunpack.c.l.b16 %v1449
        %v1489 = vunpack.c.l.b16 %v1450
        %v1490 = vunpack.c.l.b16 %v1451
        %v1491 = vunpack.c.l.b16 %v1452
        %v1492 = vunpack.c.l.b16 %v1453
        %v1493 = vunpack.c.l.b16 %v1454
        %v1494 = vpack.c.b16 %v1479, %v1478
        %v1495 = vpack.c.b16 %v1481, %v1480
        %v1496 = vpack.c.b16 %v1483, %v1482
        %v1497 = vpack.c.b16 %v1485, %v1484
        %v1498 = vpack.c.b16 %v1487, %v1486
        %v1499 = vpack.c.b16 %v1489, %v1488
        %v1500 = vpack.c.b16 %v1491, %v1490
        %v1501 = vpack.c.b16 %v1493, %v1492
        %1510 = vmatprep.subr.bf16.mxu0 0
        %1511 = vmatpush1.bf16.msra.mxu0 %v1494
        %1512 = vmatprep.subr.bf16.mxu0 0
        %1513 = vmatpush1.bf16.msra.mxu0 %v1495
        %1514 = vmatprep.subr.bf16.mxu0 0
        %1515 = vmatpush1.bf16.msra.mxu0 %v1496
        %1516 = vmatprep.subr.bf16.mxu0 0
        %1517 = vmatpush1.bf16.msra.mxu0 %v1497
        %1518 = vmatprep.subr.bf16.mxu0 0
        %1519 = vmatpush1.bf16.msra.mxu0 %v1498
        %1520 = vmatprep.subr.bf16.mxu0 0
        %1521 = vmatpush1.bf16.msra.mxu0 %v1499
        %1522 = vmatprep.subr.bf16.mxu0 0
        %1523 = vmatpush1.bf16.msra.mxu0 %v1500
        %1524 = vmatprep.subr.bf16.mxu0 0
        %1525 = vmatpush1.bf16.msra.mxu0 %v1501
        %1526 = vmatprep.subr.bf16.mxu0 0
        %1527 = vmatpush1.bf16.msra.mxu0 0
        %1528 = vmatprep.subr.bf16.mxu0 0
        %1529 = vmatpush1.bf16.msra.mxu0 0
        %1530 = vmatprep.subr.bf16.mxu0 0
        %1531 = vmatpush1.bf16.msra.mxu0 0
        %1532 = vmatprep.subr.bf16.mxu0 0
        %1533 = vmatpush1.bf16.msra.mxu0 0
        %1534 = vmatprep.subr.bf16.mxu0 0
        %1535 = vmatpush1.bf16.msra.mxu0 0
        %1536 = vmatprep.subr.bf16.mxu0 0
        %1537 = vmatpush1.bf16.msra.mxu0 0
        %1538 = vmatprep.subr.bf16.mxu0 0
        %1539 = vmatpush1.bf16.msra.mxu0 0
        %1540 = vmatprep.subr.bf16.mxu0 0
        %1541 = vmatpush1.bf16.msra.mxu0 0
        %1542 = vmatprep.mubr.bf16.mxu0 0
        %1543 = vmatmul.mubr.bf16.gmra.mrb[0].mxu0 %v1438
        %v1544 = vpop.f32.mrb[0].mxu0
        %v1545 = vadd.f32 %v1460, %v1544
        %v1546 = vpop.f32.mrb[0].mxu0
        %v1547 = vpop.f32.mrb[0].mxu0
        %v1548 = vpop.f32.mrb[0].mxu0
        %1549 = vdwg.mxu0
        %1550 = vst [vmem:[%s522] sm:$0xff] %v1545
        %s1551 = sand.u32 %s241, 1
        %s1552 = scalar_lea.sflag [#allocation5], %s1551
        %s1553 = sand.u32 %s241, 1
        %s1554 = smul.addr %s1553, 8
        %s1555 = scalar_lea.vmem [#allocation18], %s1554
        // Predicated region
        $region97: #{decoder_forward.1} parent=55 // pred_check
          %p1556 = pneg %p251
        $region98: #{decoder_forward.1} parent=55 // pred_check_branch
          %1558 = sbr.rel (%p1556) target = $region100
        $region99: #{decoder_forward.1} parent=55 // pred_region
          %s1560 = ssub.s32 128, 128
          %1561 = vsyncadd %s1552, %s1560
          %s1562 = smul.addr %s34, 128
          %s1563 = scalar_lea.hbm %s9, %s1562
          %s1565 = sshll.u32 %s1555, 4
          %s1566 = int_to_ptr.vmem [resolvable:$true] %s1565
          %1568 = dma.vmem_to_hbm [thread:$0]  %s1566, 128, %s1563, %s1552
        $region100: #{decoder_forward.1} parent=55 // pred_fallthru
          _
        // Predicated region
        $region101: #{decoder_forward.1} parent=55 // pred_check
          %p1569 = pneg %p272
        $region102: #{decoder_forward.1} parent=55 // pred_check_branch
          %1571 = sbr.rel (%p1569) target = $region104
        $region103: #{decoder_forward.1} parent=55 // pred_region
          %s1573 = ssub.s32 256, 256
          %1574 = vsyncadd [#allocation20], %s1573
          %s1575 = sshll.u32 [#allocation19], 4
          %s1576 = int_to_ptr.vmem [resolvable:$true] %s1575
          %1581 = dma.vmem_to_hbm [thread:$0]  %s1576, 256, %s10, [#allocation20], 128, 128, 8
        $region104: #{decoder_forward.1} parent=55 // pred_fallthru
          _
        // Predicated region
        $region105: #{decoder_forward.1} parent=55 // pred_check
          %p1582 = pneg %p293
        $region106: #{decoder_forward.1} parent=55 // pred_check_branch
          %1584 = sbr.rel (%p1582) target = $region108
        $region107: #{decoder_forward.1} parent=55 // pred_region
          %s1586 = ssub.s32 256, 256
          %1587 = vsyncadd [#allocation20], %s1586
          %s1588 = sshll.u32 [#allocation21], 4
          %s1589 = int_to_ptr.vmem [resolvable:$true] %s1588
          %1594 = dma.vmem_to_hbm [thread:$0]  %s1589, 256, %s11, [#allocation20], 128, 128, 8
        $region108: #{decoder_forward.1} parent=55 // pred_fallthru
          _
        // Predicated region
        $region109: #{decoder_forward.1} parent=55 // pred_check
          %p1595 = pneg %p272
        $region110: #{decoder_forward.1} parent=55 // pred_check_branch
          %1597 = sbr.rel (%p1595) target = $region112
        $region111: #{decoder_forward.1} parent=55 // pred_region
          %1598 = dma.done [#allocation20], 256
        $region112: #{decoder_forward.1} parent=55 // pred_fallthru
          _
        // Predicated region
        $region113: #{decoder_forward.1} parent=55 // pred_check
          %p1599 = pneg %p293
        $region114: #{decoder_forward.1} parent=55 // pred_check_branch
          %1601 = sbr.rel (%p1599) target = $region116
        $region115: #{decoder_forward.1} parent=55 // pred_region
          %1602 = dma.done [#allocation20], 256
        $region116: #{decoder_forward.1} parent=55 // pred_fallthru
          _
      $region56: #{decoder_forward.1} parent=5 // pred_fallthru
        _
      %p1603 = scmp.le.s32.totalorder 2, %s29
      // Predicated region
      $region117: #{decoder_forward.1} parent=5 // pred_check
        %p1604 = pneg %p1603
      $region118: #{decoder_forward.1} parent=5 // pred_check_branch
        %1606 = sbr.rel (%p1604) target = $region120
      $region119: #{decoder_forward.1} parent=5 // pred_region
        %s1607 = ssub.s32 %s29, 2
        // Predicated region
        $region121: #{decoder_forward.1} parent=119 // pred_check
          %p1608 = pneg %p257
        $region122: #{decoder_forward.1} parent=119 // pred_check_branch
          %1610 = sbr.rel (%p1608) target = $region124
        $region123: #{decoder_forward.1} parent=119 // pred_region
          %s1611 = sand.u32 %s242, 1
          %s1612 = scalar_lea.sflag [#allocation5], %s1611
          %s1613 = sand.u32 %s242, 1
          %s1614 = smul.addr %s1613, 8
          %s1615 = scalar_lea.vmem [#allocation18], %s1614
          %1616 = dma.done %s1612, 128
        $region124: #{decoder_forward.1} parent=119 // pred_fallthru
          _
      $region120: #{decoder_forward.1} parent=5 // pred_fallthru
        _
    $region6: #{decoder_forward.1} parent=1 // loop_footer
      %s33 = sadd.s32 1, %s29
    $region7: #{decoder_forward.1} parent=1 // loop_footer_branch
      %28 = sbr.rel target = $region3
    $region8: #{decoder_forward.1} parent=1 // loop_exit
      _
    %1617 = vsyncpa [#allocation4], 1
    %s1618 = scalar_lea.sflag [#allocation4], 1
    %1619 = vsyncpa %s1618, 1
    %1620 = vsyncpa [#allocation7], 1
    %1621 = vsyncpa [#allocation10], 1
    %1622 = vsyncpa [#allocation13], 1
    %1623 = vsyncpa [#allocation16], 1
    %s1624 = scalar_lea.sflag [#allocation16], 1
    %1625 = vsyncpa %s1624, 1
    %1626 = vsyncpa [#allocation5], 1
    %s1627 = scalar_lea.sflag [#allocation5], 1
    %1628 = vsyncpa %s1627, 1
    %1629 = vsyncpa [#allocation20], 1

</llo_original>
